<compile_context>
chip_gen: v5e
topology: v5e:2x2
jax: 0.10.0
libtpu: 0.0.40
codegen_flags: <defaults>
</compile_context>

<pallas_src>
import math

import jax
import jax.numpy as jnp
from jax.experimental import pallas as pl
from jax.experimental.pallas import tpu as pltpu

# ---- small synthetic "BERT" config (shapes implied by the module) ----
VOCAB = 128       # len(tokenizer) after resize_token_embeddings
HIDDEN = 32       # config.hidden_size
N_HEADS = 2
HEAD_DIM = HIDDEN // N_HEADS
INTER = 64        # intermediate (FFN) size
N_LAYERS = 2
MAX_POS = 16
TYPE_VOCAB = 2
N_LABELS = 4      # self.nlabels
LN_EPS = 1e-12

MXU_DTYPE = jnp.bfloat16   # encoder MXU operand dtype; accumulation stays f32


# ---------------- in-kernel helpers (f32 elementwise math) ----------------

def _ln(h, g, b):
    mu = jnp.mean(h, axis=-1, keepdims=True)
    var = jnp.mean((h - mu) ** 2, axis=-1, keepdims=True)
    return (h - mu) * jax.lax.rsqrt(var + LN_EPS) * g + b


def _gelu(y):
    # TODO(synk): HF BERT uses erf-based GELU; tanh approximation used here
    # (lax.erf lowering inside Mosaic is not guaranteed on all generations).
    return 0.5 * y * (1.0 + jnp.tanh(0.7978845608028654 * (y + 0.044715 * y * y * y)))


def _dot_bf16(a_f32, w_bf16):
    """bf16 x bf16 MXU matmul with f32 accumulation (encoder path)."""
    return jnp.dot(a_f32.astype(MXU_DTYPE), w_bf16,
                   preferred_element_type=jnp.float32)


def _dot_f32(a_f32, w_f32):
    """f32 MXU matmul (MLM head / decoder — parity with the f32 torch model)."""
    return jnp.dot(a_f32, w_f32, preferred_element_type=jnp.float32)


# ---------------- the single fused forward kernel ----------------

def _fused_kernel(
    # inputs
    word_ids_ref, pos_ids_ref, type_ids_ref, amask_ref, labels_ref,
    word_emb_ref, pos_emb_ref, type_emb_ref,
    emb_ln_g_ref, emb_ln_b_ref,
    wqkv_ref, bqkv_ref, wo_ref, bo_ref,
    ln1_g_ref, ln1_b_ref,
    w1_ref, b1_ref, w2_ref, b2_ref,
    ln2_g_ref, ln2_b_ref,
    mlm_w_ref, mlm_b_ref, mlm_ln_g_ref, mlm_ln_b_ref,
    dec_w_ref, dec_b_ref,
    # outputs
    hidden_ref, mlm_logits_ref, loss_ref,
):
    BS = word_ids_ref.shape[0]
    B = amask_ref.shape[0]
    S = amask_ref.shape[2]

    # ---- embeddings, fully in-kernel ----
    # word / position lookups as one-hot MXU matmuls (exact: one-hot is f32).
    wid = word_ids_ref[...]                                          # (BS, 1) i32
    col_v = jax.lax.broadcasted_iota(jnp.int32, (BS, VOCAB), 1)
    emb = _dot_f32((col_v == wid).astype(jnp.float32), word_emb_ref[...])

    pid = pos_ids_ref[...]                                           # (BS, 1) i32
    col_p = jax.lax.broadcasted_iota(jnp.int32, (BS, MAX_POS), 1)
    emb = emb + _dot_f32((col_p == pid).astype(jnp.float32), pos_emb_ref[...])

    # token-type table has only 2 rows -> a select beats a K=2 matmul.
    tid = type_ids_ref[...]                                          # (BS, 1) i32
    emb = emb + jnp.where(tid == 0, type_emb_ref[0:1, :], type_emb_ref[1:2, :])

    x = _ln(emb, emb_ln_g_ref[...], emb_ln_b_ref[...])               # (BS, H) f32

    # ---- attention-mask bias, built + broadcast ONCE (hoisted) ----
    bias = (1.0 - amask_ref[...]) * -1e9                             # (B, 1, S)
    mask_b = jnp.broadcast_to(bias, (B, S, S))
    mask_f = jnp.concatenate([mask_b] * N_HEADS, axis=0)             # (NH*B, S, S)

    for l in range(N_LAYERS):
        # hoisted per-layer parameter reads
        w_qkv = wqkv_ref[l]                                          # (H, 3H) bf16 (q pre-scaled)
        b_qkv = bqkv_ref[l]                                          # (1, 3H) f32
        w_o = wo_ref[l]
        b_o = bo_ref[l]
        g1, be1 = ln1_g_ref[l], ln1_b_ref[l]
        w_1, b_1 = w1_ref[l], b1_ref[l]
        w_2, b_2 = w2_ref[l], b2_ref[l]
        g2, be2 = ln2_g_ref[l], ln2_b_ref[l]

        # ---- self attention: fused QKV projection, heads fused into batch ----
        qkv = _dot_bf16(x, w_qkv) + b_qkv                            # (BS, 3H) f32

        def _heads(base):
            # split per head (lane slice), fold rows to (B, S, Dh), stack heads
            # along the batch axis -> a single-batch-dim einsum over NH*B.
            parts = [qkv[:, base + h * HEAD_DIM: base + (h + 1) * HEAD_DIM]
                     .reshape(B, S, HEAD_DIM) for h in range(N_HEADS)]
            return jnp.concatenate(parts, axis=0).astype(MXU_DTYPE)  # (NH*B, S, Dh)

        q4 = _heads(0)                     # 1/sqrt(Dh) already folded into weights
        k4 = _heads(HIDDEN)
        v4 = _heads(2 * HIDDEN)

        s = jnp.einsum("bqd,bkd->bqk", q4, k4,
                       preferred_element_type=jnp.float32)           # (NH*B, S, S)
        s = s + mask_f
        s = s - jnp.max(s, axis=-1, keepdims=True)
        p = jnp.exp(s)
        p = p * pl.reciprocal(jnp.sum(p, axis=-1, keepdims=True), approx=True)
        ctx4 = jnp.einsum("bqk,bkd->bqd", p.astype(MXU_DTYPE), v4,
                          preferred_element_type=jnp.float32)        # (NH*B, S, Dh)

        # merge heads (lane concat) -> ONE output projection matmul
        ctx = jnp.concatenate(
            [ctx4[h * B:(h + 1) * B].reshape(BS, HEAD_DIM) for h in range(N_HEADS)],
            axis=-1)                                                 # (BS, H) f32
        attn = _dot_bf16(ctx, w_o) + b_o
        x = _ln(attn + x, g1, be1)                                   # fused add + LN

        # ---- feed-forward ----
        ff = _gelu(_dot_bf16(x, w_1) + b_1)                          # (BS, INTER)
        ff = _dot_bf16(ff, w_2) + b_2                                # (BS, H)
        x = _ln(ff + x, g2, be2)

    hidden_ref[...] = x                                              # outputs.hidden_states[-1]

    # ---- MLM head (kept f32): dense + gelu + LN, decoder to vocab ----
    t = _gelu(_dot_f32(x, mlm_w_ref[...]) + mlm_b_ref[...])
    t = _ln(t, mlm_ln_g_ref[...], mlm_ln_b_ref[...])
    logits = _dot_f32(t, dec_w_ref[...]) + dec_b_ref[...]            # (BS, V=128) lane-dense
    mlm_logits_ref[...] = logits

    # ---- masked cross-entropy (ignore_index=-100, mean over valid) ----
    labels = labels_ref[...]                                         # (BS, 1) i32
    m = jnp.max(logits, axis=-1, keepdims=True)
    lse = jnp.log(jnp.sum(jnp.exp(logits - m), axis=-1, keepdims=True)) + m
    col = jax.lax.broadcasted_iota(jnp.int32, logits.shape, 1)
    onehot = (col == labels).astype(jnp.float32)
    label_logit = jnp.sum(logits * onehot, axis=-1, keepdims=True)
    valid = (labels != -100).astype(jnp.float32)
    nll = (lse - label_logit) * valid
    # NOTE: all-ignored labels -> 0/0 = NaN, matching torch CrossEntropyLoss mean.
    loss_ref[0, 0] = jnp.sum(nll) / jnp.sum(valid)


def _fused_forward(kp, word_ids, pos_ids, type_ids, amask, labels2d):
    BS = word_ids.shape[0]
    out_shape = (
        jax.ShapeDtypeStruct((BS, HIDDEN), jnp.float32),   # last hidden states
        jax.ShapeDtypeStruct((BS, VOCAB), jnp.float32),    # mlm logits (lane-dense)
        jax.ShapeDtypeStruct((1, 1), jnp.float32),         # mlm loss (scalar)
    )
    out_specs = (
        pl.BlockSpec(memory_space=pltpu.MemorySpace.VMEM),
        pl.BlockSpec(memory_space=pltpu.MemorySpace.VMEM),
        pl.BlockSpec(memory_space=pltpu.MemorySpace.SMEM),
    )
    return pl.pallas_call(
        _fused_kernel,
        out_shape=out_shape,
        out_specs=out_specs,
    )(
        word_ids, pos_ids, type_ids, amask, labels2d,
        kp["word_emb"], kp["pos_emb"], kp["type_emb"],
        kp["emb_ln_g"], kp["emb_ln_b"],
        kp["wqkv"], kp["bqkv"], kp["wo"], kp["bo"],
        kp["ln1_g"], kp["ln1_b"],
        kp["w1"], kp["b1"], kp["w2"], kp["b2"],
        kp["ln2_g"], kp["ln2_b"],
        kp["mlm_dense_w"], kp["mlm_dense_b"], kp["mlm_ln_g"], kp["mlm_ln_b"],
        kp["decoder_w"], kp["decoder_b"],
    )


# ---------------- parameter init (deterministic, synthetic) ----------------

def init_params(key):
    keys = iter(jax.random.split(key, 64))

    def w(shape, scale=0.02):
        return jax.random.normal(next(keys), shape, jnp.float32) * scale

    return dict(
        word_emb=w((VOCAB, HIDDEN)),
        pos_emb=w((MAX_POS, HIDDEN)),
        type_emb=w((TYPE_VOCAB, HIDDEN)),
        emb_ln_g=jnp.ones((1, HIDDEN), jnp.float32),
        emb_ln_b=jnp.zeros((1, HIDDEN), jnp.float32),
        # per-layer weights stacked on a leading layer axis
        wqkv=w((N_LAYERS, HIDDEN, 3 * HIDDEN)),
        bqkv=jnp.zeros((N_LAYERS, 1, 3 * HIDDEN), jnp.float32),
        wo=w((N_LAYERS, HIDDEN, HIDDEN)),
        bo=jnp.zeros((N_LAYERS, 1, HIDDEN), jnp.float32),
        ln1_g=jnp.ones((N_LAYERS, 1, HIDDEN), jnp.float32),
        ln1_b=jnp.zeros((N_LAYERS, 1, HIDDEN), jnp.float32),
        w1=w((N_LAYERS, HIDDEN, INTER)),
        b1=jnp.zeros((N_LAYERS, 1, INTER), jnp.float32),
        w2=w((N_LAYERS, INTER, HIDDEN)),
        b2=jnp.zeros((N_LAYERS, 1, HIDDEN), jnp.float32),
        ln2_g=jnp.ones((N_LAYERS, 1, HIDDEN), jnp.float32),
        ln2_b=jnp.zeros((N_LAYERS, 1, HIDDEN), jnp.float32),
        # MLM head (kept f32 end-to-end for logits/loss parity)
        mlm_dense_w=w((HIDDEN, HIDDEN)),
        mlm_dense_b=jnp.zeros((1, HIDDEN), jnp.float32),
        mlm_ln_g=jnp.ones((1, HIDDEN), jnp.float32),
        mlm_ln_b=jnp.zeros((1, HIDDEN), jnp.float32),
        decoder_w=w((HIDDEN, VOCAB)),
        decoder_b=jnp.zeros((1, VOCAB), jnp.float32),
        # classifier head (nn.Linear(hidden_size, nlabels))
        cls_w=w((HIDDEN, N_LABELS)),
        cls_b=jnp.zeros((N_LABELS,), jnp.float32),
    )


def prepare_params(p):
    """One-time kernel-ready weight prep: fold 1/sqrt(Dh) into the Q block of
    the QKV projection and pre-cast encoder matmul weights to bf16, so the
    jitted forward wrapper emits zero weight-prep ops per call."""
    wdt = MXU_DTYPE
    scale = 1.0 / math.sqrt(HEAD_DIM)
    wqkv = p["wqkv"].at[:, :, :HIDDEN].multiply(scale)
    bqkv = p["bqkv"].at[:, :, :HIDDEN].multiply(scale)
    kp = dict(p)
    kp.update(
        wqkv=wqkv.astype(wdt), bqkv=bqkv,
        wo=p["wo"].astype(wdt),
        w1=p["w1"].astype(wdt),
        w2=p["w2"].astype(wdt),
    )
    return kp


# ---------------- forward pass (taskModel.forward) ----------------

def task_model_forward(kp, input_ids, attention_mask, token_type_ids,
                       position_ids=None, mlmlabels=None):
    B, S = input_ids.shape
    BS = B * S
    if position_ids is None:
        position_ids = jnp.broadcast_to(
            jnp.arange(S, dtype=jnp.int32)[None, :], (B, S))

    # only id reshapes remain in the wrapper (embedding math is in-kernel)
    word_ids = input_ids.reshape(BS, 1).astype(jnp.int32)
    pos_ids = position_ids.reshape(BS, 1).astype(jnp.int32)
    type_ids = token_type_ids.reshape(BS, 1).astype(jnp.int32)
    amask = attention_mask.astype(jnp.float32).reshape(B, 1, S)

    if mlmlabels is None:
        labels2d = jnp.full((BS, 1), -100, jnp.int32)
    else:
        labels2d = mlmlabels.reshape(BS, 1).astype(jnp.int32)

    hidden2d, mlm_logits2d, loss_out = _fused_forward(
        kp, word_ids, pos_ids, type_ids, amask, labels2d)

    hidden_states = hidden2d.reshape(B, S, HIDDEN)      # outputs.hidden_states[-1]
    mlm_logits = mlm_logits2d.reshape(B, S, VOCAB)

    # classifier head on [CLS]: tiny (B, H) @ (H, nlabels) — plain JAX on purpose
    # (a dedicated pallas_call would be launch overhead + lane-sparse stores).
    # nn.Dropout(0.1) is identity at inference time (eval mode).
    cls_logits = hidden_states[:, 0]
    logits = cls_logits @ kp["cls_w"] + kp["cls_b"]

    loss = loss_out[0, 0] if mlmlabels is not None else None
    return loss, logits, mlm_logits, hidden_states


if __name__ == "__main__":
    key = jax.random.PRNGKey(0)
    k_params, k_ids, k_lbl = jax.random.split(key, 3)

    params = init_params(k_params)
    kparams = prepare_params(params)    # one-time weight prep (outside jit)

    B, S = 2, 8
    input_ids = jax.random.randint(k_ids, (B, S), 0, VOCAB, dtype=jnp.int32)
    attention_mask = jnp.array([[1, 1, 1, 1, 1, 1, 1, 1],
                                [1, 1, 1, 1, 1, 1, 0, 0]], dtype=jnp.int32)
    token_type_ids = jnp.zeros((B, S), dtype=jnp.int32)
    # mask-LM labels: a couple of masked positions, rest ignored (-100)
    rand_targets = jax.random.randint(k_lbl, (B, S), 0, VOCAB, dtype=jnp.int32)
    mlm_positions = jnp.array([[0, 1, 0, 0, 1, 0, 0, 0],
                               [0, 0, 1, 0, 0, 1, 0, 0]], dtype=jnp.bool_)
    mlmlabels = jnp.where(mlm_positions, rand_targets, -100).astype(jnp.int32)

    fwd = jax.jit(task_model_forward)
    loss, logits, mlm_logits, hidden_states = fwd(
        kparams, input_ids, attention_mask, token_type_ids, mlmlabels=mlmlabels)

    jax.block_until_ready((loss, logits, mlm_logits, hidden_states))

    assert logits.shape == (B, N_LABELS)
    assert mlm_logits.shape == (B, S, VOCAB)
    assert hidden_states.shape == (B, S, HIDDEN)
    assert loss.shape == ()
    assert bool(jnp.isfinite(loss))

    print("KERNEL_OK")
</pallas_src>

<mosaic_0001>
module attributes {stable_mosaic.version = 11 : i64} {
  func.func @_fused_kernel(%arg0: memref<16x1xi32, #tpu.memory_space<vmem>>, %arg1: memref<16x1xi32, #tpu.memory_space<vmem>>, %arg2: memref<16x1xi32, #tpu.memory_space<vmem>>, %arg3: memref<2x1x8xf32, #tpu.memory_space<vmem>>, %arg4: memref<16x1xi32, #tpu.memory_space<vmem>>, %arg5: memref<128x32xf32, #tpu.memory_space<vmem>>, %arg6: memref<16x32xf32, #tpu.memory_space<vmem>>, %arg7: memref<2x32xf32, #tpu.memory_space<vmem>>, %arg8: memref<1x32xf32, #tpu.memory_space<vmem>>, %arg9: memref<1x32xf32, #tpu.memory_space<vmem>>, %arg10: memref<2x32x96xbf16, #tpu.memory_space<vmem>>, %arg11: memref<2x1x96xf32, #tpu.memory_space<vmem>>, %arg12: memref<2x32x32xbf16, #tpu.memory_space<vmem>>, %arg13: memref<2x1x32xf32, #tpu.memory_space<vmem>>, %arg14: memref<2x1x32xf32, #tpu.memory_space<vmem>>, %arg15: memref<2x1x32xf32, #tpu.memory_space<vmem>>, %arg16: memref<2x32x64xbf16, #tpu.memory_space<vmem>>, %arg17: memref<2x1x64xf32, #tpu.memory_space<vmem>>, %arg18: memref<2x64x32xbf16, #tpu.memory_space<vmem>>, %arg19: memref<2x1x32xf32, #tpu.memory_space<vmem>>, %arg20: memref<2x1x32xf32, #tpu.memory_space<vmem>>, %arg21: memref<2x1x32xf32, #tpu.memory_space<vmem>>, %arg22: memref<32x32xf32, #tpu.memory_space<vmem>>, %arg23: memref<1x32xf32, #tpu.memory_space<vmem>>, %arg24: memref<1x32xf32, #tpu.memory_space<vmem>>, %arg25: memref<1x32xf32, #tpu.memory_space<vmem>>, %arg26: memref<32x128xf32, #tpu.memory_space<vmem>>, %arg27: memref<1x128xf32, #tpu.memory_space<vmem>>, %arg28: memref<16x32xf32, #tpu.memory_space<vmem>>, %arg29: memref<16x128xf32, #tpu.memory_space<vmem>>, %arg30: memref<1x1xf32, #tpu.memory_space<smem>>) attributes {dimension_semantics = [], scalar_prefetch = 0 : i64, scratch_operands = 0 : i64, tpu.core_type = #tpu.core_type<tc>} {
    %c0 = arith.constant 0 : index
    %c0_0 = arith.constant 0 : index
    %0 = vector.load %arg0[%c0, %c0_0] : memref<16x1xi32, #tpu.memory_space<vmem>>, vector<16x1xi32>
    %1 = tpu.iota {dimensions = array<i32: 1>} : vector<16x128xi32>
    %2 = vector.broadcast %0 : vector<16x1xi32> to vector<16x128xi32>
    %3 = arith.cmpi eq, %1, %2 : vector<16x128xi32>
    %4 = arith.extui %3 : vector<16x128xi1> to vector<16x128xi32>
    %5 = arith.sitofp %4 : vector<16x128xi32> to vector<16x128xf32>
    %c0_1 = arith.constant 0 : index
    %c0_2 = arith.constant 0 : index
    %6 = vector.load %arg5[%c0_1, %c0_2] : memref<128x32xf32, #tpu.memory_space<vmem>>, vector<128x32xf32>
    %cst = arith.constant dense<0.000000e+00> : vector<16x32xf32>
    %7 = tpu.matmul %5, %6, %cst {dimension_numbers = #tpu.dot_dimension_numbers<[1], [0], [0], [1], [0, 0, 1, 1], [], []>} : vector<16x128xf32>, vector<128x32xf32>, vector<16x32xf32> -> vector<16x32xf32>
    %c0_3 = arith.constant 0 : index
    %c0_4 = arith.constant 0 : index
    %8 = vector.load %arg1[%c0_3, %c0_4] : memref<16x1xi32, #tpu.memory_space<vmem>>, vector<16x1xi32>
    %9 = tpu.iota {dimensions = array<i32: 1>} : vector<16x16xi32>
    %10 = vector.broadcast %8 : vector<16x1xi32> to vector<16x16xi32>
    %11 = arith.cmpi eq, %9, %10 : vector<16x16xi32>
    %12 = arith.extui %11 : vector<16x16xi1> to vector<16x16xi32>
    %13 = arith.sitofp %12 : vector<16x16xi32> to vector<16x16xf32>
    %c0_5 = arith.constant 0 : index
    %c0_6 = arith.constant 0 : index
    %14 = vector.load %arg6[%c0_5, %c0_6] : memref<16x32xf32, #tpu.memory_space<vmem>>, vector<16x32xf32>
    %cst_7 = arith.constant dense<0.000000e+00> : vector<16x32xf32>
    %15 = tpu.matmul %13, %14, %cst_7 {dimension_numbers = #tpu.dot_dimension_numbers<[1], [0], [0], [1], [0, 0, 1, 1], [], []>} : vector<16x16xf32>, vector<16x32xf32>, vector<16x32xf32> -> vector<16x32xf32>
    %16 = arith.addf %7, %15 : vector<16x32xf32>
    %c0_8 = arith.constant 0 : index
    %c0_9 = arith.constant 0 : index
    %17 = vector.load %arg2[%c0_8, %c0_9] : memref<16x1xi32, #tpu.memory_space<vmem>>, vector<16x1xi32>
    %c0_i32 = arith.constant 0 : i32
    %18 = vector.broadcast %c0_i32 : i32 to vector<16x1xi32>
    %19 = arith.cmpi eq, %17, %18 : vector<16x1xi32>
    %c0_10 = arith.constant 0 : index
    %c0_11 = arith.constant 0 : index
    %20 = vector.load %arg7[%c0_10, %c0_11] : memref<2x32xf32, #tpu.memory_space<vmem>>, vector<1x32xf32>
    %c1 = arith.constant 1 : index
    %c0_12 = arith.constant 0 : index
    %21 = vector.load %arg7[%c1, %c0_12] : memref<2x32xf32, #tpu.memory_space<vmem>>, vector<1x32xf32>
    %22 = vector.shape_cast %19 : vector<16x1xi1> to vector<16x1xi1>
    %23 = vector.broadcast %22 : vector<16x1xi1> to vector<16x32xi1>
    %24 = vector.shape_cast %20 : vector<1x32xf32> to vector<1x32xf32>
    %25 = vector.broadcast %24 : vector<1x32xf32> to vector<16x32xf32>
    %26 = vector.shape_cast %21 : vector<1x32xf32> to vector<1x32xf32>
    %27 = vector.broadcast %26 : vector<1x32xf32> to vector<16x32xf32>
    %28 = arith.select %23, %25, %27 : vector<16x32xi1>, vector<16x32xf32>
    %29 = arith.addf %16, %28 : vector<16x32xf32>
    %c0_13 = arith.constant 0 : index
    %c0_14 = arith.constant 0 : index
    %30 = vector.load %arg8[%c0_13, %c0_14] : memref<1x32xf32, #tpu.memory_space<vmem>>, vector<1x32xf32>
    %c0_15 = arith.constant 0 : index
    %c0_16 = arith.constant 0 : index
    %31 = vector.load %arg9[%c0_15, %c0_16] : memref<1x32xf32, #tpu.memory_space<vmem>>, vector<1x32xf32>
    %cst_17 = arith.constant dense<0.000000e+00> : vector<16xf32>
    %32 = vector.multi_reduction <add>, %29, %cst_17 [1] : vector<16x32xf32> to vector<16xf32>
    %33 = vector.shape_cast %32 : vector<16xf32> to vector<16x1xf32>
    %cst_18 = arith.constant 3.200000e+01 : f32
    %34 = vector.broadcast %cst_18 : f32 to vector<16x1xf32>
    %35 = arith.divf %33, %34 : vector<16x1xf32>
    %36 = vector.broadcast %35 : vector<16x1xf32> to vector<16x32xf32>
    %37 = arith.subf %29, %36 : vector<16x32xf32>
    %38 = arith.mulf %37, %37 : vector<16x32xf32>
    %cst_19 = arith.constant dense<0.000000e+00> : vector<16xf32>
    %39 = vector.multi_reduction <add>, %38, %cst_19 [1] : vector<16x32xf32> to vector<16xf32>
    %40 = vector.shape_cast %39 : vector<16xf32> to vector<16x1xf32>
    %cst_20 = arith.constant 3.200000e+01 : f32
    %41 = vector.broadcast %cst_20 : f32 to vector<16x1xf32>
    %42 = arith.divf %40, %41 : vector<16x1xf32>
    %43 = vector.broadcast %35 : vector<16x1xf32> to vector<16x32xf32>
    %44 = arith.subf %29, %43 : vector<16x32xf32>
    %cst_21 = arith.constant 9.99999996E-13 : f32
    %45 = vector.broadcast %cst_21 : f32 to vector<16x1xf32>
    %46 = arith.addf %42, %45 : vector<16x1xf32>
    %47 = math.rsqrt %46 : vector<16x1xf32>
    %48 = vector.broadcast %47 : vector<16x1xf32> to vector<16x32xf32>
    %49 = arith.mulf %44, %48 : vector<16x32xf32>
    %50 = vector.broadcast %30 : vector<1x32xf32> to vector<16x32xf32>
    %51 = arith.mulf %49, %50 : vector<16x32xf32>
    %52 = vector.broadcast %31 : vector<1x32xf32> to vector<16x32xf32>
    %53 = arith.addf %51, %52 : vector<16x32xf32>
    %c0_22 = arith.constant 0 : index
    %c0_23 = arith.constant 0 : index
    %c0_24 = arith.constant 0 : index
    %54 = vector.load %arg3[%c0_22, %c0_23, %c0_24] : memref<2x1x8xf32, #tpu.memory_space<vmem>>, vector<2x1x8xf32>
    %cst_25 = arith.constant 1.000000e+00 : f32
    %55 = vector.broadcast %cst_25 : f32 to vector<2x1x8xf32>
    %56 = arith.subf %55, %54 : vector<2x1x8xf32>
    %cst_26 = arith.constant -1.000000e+09 : f32
    %57 = vector.broadcast %cst_26 : f32 to vector<2x1x8xf32>
    %58 = arith.mulf %56, %57 : vector<2x1x8xf32>
    %59 = vector.shape_cast %58 : vector<2x1x8xf32> to vector<2x1x8xf32>
    %60 = vector.broadcast %59 : vector<2x1x8xf32> to vector<2x8x8xf32>
    %61 = tpu.concatenate %60, %60 in 0 : vector<2x8x8xf32>, vector<2x8x8xf32> -> vector<4x8x8xf32>
    %c0_27 = arith.constant 0 : index
    %c0_28 = arith.constant 0 : index
    %c0_29 = arith.constant 0 : index
    %62 = vector.load %arg10[%c0_27, %c0_28, %c0_29] : memref<2x32x96xbf16, #tpu.memory_space<vmem>>, vector<1x32x96xbf16>
    %63 = vector.shape_cast %62 : vector<1x32x96xbf16> to vector<32x96xbf16>
    %c0_30 = arith.constant 0 : index
    %c0_31 = arith.constant 0 : index
    %c0_32 = arith.constant 0 : index
    %64 = vector.load %arg11[%c0_30, %c0_31, %c0_32] : memref<2x1x96xf32, #tpu.memory_space<vmem>>, vector<1x1x96xf32>
    %65 = vector.shape_cast %64 : vector<1x1x96xf32> to vector<1x96xf32>
    %c0_33 = arith.constant 0 : index
    %c0_34 = arith.constant 0 : index
    %c0_35 = arith.constant 0 : index
    %66 = vector.load %arg12[%c0_33, %c0_34, %c0_35] : memref<2x32x32xbf16, #tpu.memory_space<vmem>>, vector<1x32x32xbf16>
    %67 = vector.shape_cast %66 : vector<1x32x32xbf16> to vector<32x32xbf16>
    %c0_36 = arith.constant 0 : index
    %c0_37 = arith.constant 0 : index
    %c0_38 = arith.constant 0 : index
    %68 = vector.load %arg13[%c0_36, %c0_37, %c0_38] : memref<2x1x32xf32, #tpu.memory_space<vmem>>, vector<1x1x32xf32>
    %69 = vector.shape_cast %68 : vector<1x1x32xf32> to vector<1x32xf32>
    %c0_39 = arith.constant 0 : index
    %c0_40 = arith.constant 0 : index
    %c0_41 = arith.constant 0 : index
    %70 = vector.load %arg14[%c0_39, %c0_40, %c0_41] : memref<2x1x32xf32, #tpu.memory_space<vmem>>, vector<1x1x32xf32>
    %71 = vector.shape_cast %70 : vector<1x1x32xf32> to vector<1x32xf32>
    %c0_42 = arith.constant 0 : index
    %c0_43 = arith.constant 0 : index
    %c0_44 = arith.constant 0 : index
    %72 = vector.load %arg15[%c0_42, %c0_43, %c0_44] : memref<2x1x32xf32, #tpu.memory_space<vmem>>, vector<1x1x32xf32>
    %73 = vector.shape_cast %72 : vector<1x1x32xf32> to vector<1x32xf32>
    %c0_45 = arith.constant 0 : index
    %c0_46 = arith.constant 0 : index
    %c0_47 = arith.constant 0 : index
    %74 = vector.load %arg16[%c0_45, %c0_46, %c0_47] : memref<2x32x64xbf16, #tpu.memory_space<vmem>>, vector<1x32x64xbf16>
    %75 = vector.shape_cast %74 : vector<1x32x64xbf16> to vector<32x64xbf16>
    %c0_48 = arith.constant 0 : index
    %c0_49 = arith.constant 0 : index
    %c0_50 = arith.constant 0 : index
    %76 = vector.load %arg17[%c0_48, %c0_49, %c0_50] : memref<2x1x64xf32, #tpu.memory_space<vmem>>, vector<1x1x64xf32>
    %77 = vector.shape_cast %76 : vector<1x1x64xf32> to vector<1x64xf32>
    %c0_51 = arith.constant 0 : index
    %c0_52 = arith.constant 0 : index
    %c0_53 = arith.constant 0 : index
    %78 = vector.load %arg18[%c0_51, %c0_52, %c0_53] : memref<2x64x32xbf16, #tpu.memory_space<vmem>>, vector<1x64x32xbf16>
    %79 = vector.shape_cast %78 : vector<1x64x32xbf16> to vector<64x32xbf16>
    %c0_54 = arith.constant 0 : index
    %c0_55 = arith.constant 0 : index
    %c0_56 = arith.constant 0 : index
    %80 = vector.load %arg19[%c0_54, %c0_55, %c0_56] : memref<2x1x32xf32, #tpu.memory_space<vmem>>, vector<1x1x32xf32>
    %81 = vector.shape_cast %80 : vector<1x1x32xf32> to vector<1x32xf32>
    %c0_57 = arith.constant 0 : index
    %c0_58 = arith.constant 0 : index
    %c0_59 = arith.constant 0 : index
    %82 = vector.load %arg20[%c0_57, %c0_58, %c0_59] : memref<2x1x32xf32, #tpu.memory_space<vmem>>, vector<1x1x32xf32>
    %83 = vector.shape_cast %82 : vector<1x1x32xf32> to vector<1x32xf32>
    %c0_60 = arith.constant 0 : index
    %c0_61 = arith.constant 0 : index
    %c0_62 = arith.constant 0 : index
    %84 = vector.load %arg21[%c0_60, %c0_61, %c0_62] : memref<2x1x32xf32, #tpu.memory_space<vmem>>, vector<1x1x32xf32>
    %85 = vector.shape_cast %84 : vector<1x1x32xf32> to vector<1x32xf32>
    %86 = arith.truncf %53 : vector<16x32xf32> to vector<16x32xbf16>
    %cst_63 = arith.constant dense<0.000000e+00> : vector<16x96xf32>
    %87 = tpu.matmul %86, %63, %cst_63 {dimension_numbers = #tpu.dot_dimension_numbers<[1], [0], [0], [1], [0, 0, 1, 1], [], []>} : vector<16x32xbf16>, vector<32x96xbf16>, vector<16x96xf32> -> vector<16x96xf32>
    %88 = vector.broadcast %65 : vector<1x96xf32> to vector<16x96xf32>
    %89 = arith.addf %87, %88 : vector<16x96xf32>
    %90 = vector.extract_strided_slice %89 {offsets = [0, 0], sizes = [16, 16], strides = [1, 1]} : vector<16x96xf32> to vector<16x16xf32>
    %91 = vector.shape_cast %90 : vector<16x16xf32> to vector<2x8x16xf32>
    %92 = vector.extract_strided_slice %89 {offsets = [0, 16], sizes = [16, 16], strides = [1, 1]} : vector<16x96xf32> to vector<16x16xf32>
    %93 = vector.shape_cast %92 : vector<16x16xf32> to vector<2x8x16xf32>
    %94 = tpu.concatenate %91, %93 in 0 : vector<2x8x16xf32>, vector<2x8x16xf32> -> vector<4x8x16xf32>
    %95 = arith.truncf %94 : vector<4x8x16xf32> to vector<4x8x16xbf16>
    %96 = vector.extract_strided_slice %89 {offsets = [0, 32], sizes = [16, 16], strides = [1, 1]} : vector<16x96xf32> to vector<16x16xf32>
    %97 = vector.shape_cast %96 : vector<16x16xf32> to vector<2x8x16xf32>
    %98 = vector.extract_strided_slice %89 {offsets = [0, 48], sizes = [16, 16], strides = [1, 1]} : vector<16x96xf32> to vector<16x16xf32>
    %99 = vector.shape_cast %98 : vector<16x16xf32> to vector<2x8x16xf32>
    %100 = tpu.concatenate %97, %99 in 0 : vector<2x8x16xf32>, vector<2x8x16xf32> -> vector<4x8x16xf32>
    %101 = arith.truncf %100 : vector<4x8x16xf32> to vector<4x8x16xbf16>
    %102 = vector.extract_strided_slice %89 {offsets = [0, 64], sizes = [16, 16], strides = [1, 1]} : vector<16x96xf32> to vector<16x16xf32>
    %103 = vector.shape_cast %102 : vector<16x16xf32> to vector<2x8x16xf32>
    %104 = vector.extract_strided_slice %89 {offsets = [0, 80], sizes = [16, 16], strides = [1, 1]} : vector<16x96xf32> to vector<16x16xf32>
    %105 = vector.shape_cast %104 : vector<16x16xf32> to vector<2x8x16xf32>
    %106 = tpu.concatenate %103, %105 in 0 : vector<2x8x16xf32>, vector<2x8x16xf32> -> vector<4x8x16xf32>
    %107 = arith.truncf %106 : vector<4x8x16xf32> to vector<4x8x16xbf16>
    "tpu.trace_start"() <{level = 10 : i32, message = "bqd,bkd->bqk"}> : () -> ()
    %cst_64 = arith.constant dense<0.000000e+00> : vector<4x8x8xf32>
    %108 = tpu.matmul %95, %101, %cst_64 {dimension_numbers = #tpu.dot_dimension_numbers<[2], [2], [1], [1], [0, 0, 0, 1, 1, 1], [0], [0]>} : vector<4x8x16xbf16>, vector<4x8x16xbf16>, vector<4x8x8xf32> -> vector<4x8x8xf32>
    "tpu.trace_stop"() : () -> ()
    %109 = arith.addf %108, %61 : vector<4x8x8xf32>
    %cst_65 = arith.constant dense<0xFF800000> : vector<4x8xf32>
    %110 = vector.multi_reduction <maximumf>, %109, %cst_65 [2] : vector<4x8x8xf32> to vector<4x8xf32>
    %111 = vector.shape_cast %110 : vector<4x8xf32> to vector<4x8x1xf32>
    %112 = vector.broadcast %111 : vector<4x8x1xf32> to vector<4x8x8xf32>
    %113 = arith.subf %109, %112 : vector<4x8x8xf32>
    %114 = math.exp %113 : vector<4x8x8xf32>
    %cst_66 = arith.constant dense<0.000000e+00> : vector<4x8xf32>
    %115 = vector.multi_reduction <add>, %114, %cst_66 [2] : vector<4x8x8xf32> to vector<4x8xf32>
    %116 = vector.shape_cast %115 : vector<4x8xf32> to vector<4x8x1xf32>
    %117 = tpu.reciprocal %116 {approx = true} : vector<4x8x1xf32> -> vector<4x8x1xf32>
    %118 = vector.broadcast %117 : vector<4x8x1xf32> to vector<4x8x8xf32>
    %119 = arith.mulf %114, %118 : vector<4x8x8xf32>
    %120 = arith.truncf %119 : vector<4x8x8xf32> to vector<4x8x8xbf16>
    "tpu.trace_start"() <{level = 10 : i32, message = "bqk,bkd->bqd"}> : () -> ()
    %cst_67 = arith.constant dense<0.000000e+00> : vector<4x8x16xf32>
    %121 = tpu.matmul %120, %107, %cst_67 {dimension_numbers = #tpu.dot_dimension_numbers<[2], [1], [1], [2], [0, 0, 0, 1, 1, 2], [0], [0]>} : vector<4x8x8xbf16>, vector<4x8x16xbf16>, vector<4x8x16xf32> -> vector<4x8x16xf32>
    "tpu.trace_stop"() : () -> ()
    %122 = vector.extract_strided_slice %121 {offsets = [0, 0, 0], sizes = [2, 8, 16], strides = [1, 1, 1]} : vector<4x8x16xf32> to vector<2x8x16xf32>
    %123 = vector.shape_cast %122 : vector<2x8x16xf32> to vector<16x16xf32>
    %124 = vector.extract_strided_slice %121 {offsets = [2, 0, 0], sizes = [2, 8, 16], strides = [1, 1, 1]} : vector<4x8x16xf32> to vector<2x8x16xf32>
    %125 = vector.shape_cast %124 : vector<2x8x16xf32> to vector<16x16xf32>
    %126 = tpu.concatenate %123, %125 in 1 : vector<16x16xf32>, vector<16x16xf32> -> vector<16x32xf32>
    %127 = arith.truncf %126 : vector<16x32xf32> to vector<16x32xbf16>
    %cst_68 = arith.constant dense<0.000000e+00> : vector<16x32xf32>
    %128 = tpu.matmul %127, %67, %cst_68 {dimension_numbers = #tpu.dot_dimension_numbers<[1], [0], [0], [1], [0, 0, 1, 1], [], []>} : vector<16x32xbf16>, vector<32x32xbf16>, vector<16x32xf32> -> vector<16x32xf32>
    %129 = vector.broadcast %69 : vector<1x32xf32> to vector<16x32xf32>
    %130 = arith.addf %128, %129 : vector<16x32xf32>
    %131 = arith.addf %130, %53 : vector<16x32xf32>
    %cst_69 = arith.constant dense<0.000000e+00> : vector<16xf32>
    %132 = vector.multi_reduction <add>, %131, %cst_69 [1] : vector<16x32xf32> to vector<16xf32>
    %133 = vector.shape_cast %132 : vector<16xf32> to vector<16x1xf32>
    %cst_70 = arith.constant 3.200000e+01 : f32
    %134 = vector.broadcast %cst_70 : f32 to vector<16x1xf32>
    %135 = arith.divf %133, %134 : vector<16x1xf32>
    %136 = vector.broadcast %135 : vector<16x1xf32> to vector<16x32xf32>
    %137 = arith.subf %131, %136 : vector<16x32xf32>
    %138 = arith.mulf %137, %137 : vector<16x32xf32>
    %cst_71 = arith.constant dense<0.000000e+00> : vector<16xf32>
    %139 = vector.multi_reduction <add>, %138, %cst_71 [1] : vector<16x32xf32> to vector<16xf32>
    %140 = vector.shape_cast %139 : vector<16xf32> to vector<16x1xf32>
    %cst_72 = arith.constant 3.200000e+01 : f32
    %141 = vector.broadcast %cst_72 : f32 to vector<16x1xf32>
    %142 = arith.divf %140, %141 : vector<16x1xf32>
    %143 = vector.broadcast %135 : vector<16x1xf32> to vector<16x32xf32>
    %144 = arith.subf %131, %143 : vector<16x32xf32>
    %cst_73 = arith.constant 9.99999996E-13 : f32
    %145 = vector.broadcast %cst_73 : f32 to vector<16x1xf32>
    %146 = arith.addf %142, %145 : vector<16x1xf32>
    %147 = math.rsqrt %146 : vector<16x1xf32>
    %148 = vector.broadcast %147 : vector<16x1xf32> to vector<16x32xf32>
    %149 = arith.mulf %144, %148 : vector<16x32xf32>
    %150 = vector.broadcast %71 : vector<1x32xf32> to vector<16x32xf32>
    %151 = arith.mulf %149, %150 : vector<16x32xf32>
    %152 = vector.broadcast %73 : vector<1x32xf32> to vector<16x32xf32>
    %153 = arith.addf %151, %152 : vector<16x32xf32>
    %154 = arith.truncf %153 : vector<16x32xf32> to vector<16x32xbf16>
    %cst_74 = arith.constant dense<0.000000e+00> : vector<16x64xf32>
    %155 = tpu.matmul %154, %75, %cst_74 {dimension_numbers = #tpu.dot_dimension_numbers<[1], [0], [0], [1], [0, 0, 1, 1], [], []>} : vector<16x32xbf16>, vector<32x64xbf16>, vector<16x64xf32> -> vector<16x64xf32>
    %156 = vector.broadcast %77 : vector<1x64xf32> to vector<16x64xf32>
    %157 = arith.addf %155, %156 : vector<16x64xf32>
    %cst_75 = arith.constant 5.000000e-01 : f32
    %158 = vector.broadcast %cst_75 : f32 to vector<16x64xf32>
    %159 = arith.mulf %158, %157 : vector<16x64xf32>
    %cst_76 = arith.constant 4.471500e-02 : f32
    %160 = vector.broadcast %cst_76 : f32 to vector<16x64xf32>
    %161 = arith.mulf %160, %157 : vector<16x64xf32>
    %162 = arith.mulf %161, %157 : vector<16x64xf32>
    %163 = arith.mulf %162, %157 : vector<16x64xf32>
    %164 = arith.addf %157, %163 : vector<16x64xf32>
    %cst_77 = arith.constant 0.797884583 : f32
    %165 = vector.broadcast %cst_77 : f32 to vector<16x64xf32>
    %166 = arith.mulf %165, %164 : vector<16x64xf32>
    %167 = math.tanh %166 : vector<16x64xf32>
    %cst_78 = arith.constant 1.000000e+00 : f32
    %168 = vector.broadcast %cst_78 : f32 to vector<16x64xf32>
    %169 = arith.addf %168, %167 : vector<16x64xf32>
    %170 = arith.mulf %159, %169 : vector<16x64xf32>
    %171 = arith.truncf %170 : vector<16x64xf32> to vector<16x64xbf16>
    %cst_79 = arith.constant dense<0.000000e+00> : vector<16x32xf32>
    %172 = tpu.matmul %171, %79, %cst_79 {dimension_numbers = #tpu.dot_dimension_numbers<[1], [0], [0], [1], [0, 0, 1, 1], [], []>} : vector<16x64xbf16>, vector<64x32xbf16>, vector<16x32xf32> -> vector<16x32xf32>
    %173 = vector.broadcast %81 : vector<1x32xf32> to vector<16x32xf32>
    %174 = arith.addf %172, %173 : vector<16x32xf32>
    %175 = arith.addf %174, %153 : vector<16x32xf32>
    %cst_80 = arith.constant dense<0.000000e+00> : vector<16xf32>
    %176 = vector.multi_reduction <add>, %175, %cst_80 [1] : vector<16x32xf32> to vector<16xf32>
    %177 = vector.shape_cast %176 : vector<16xf32> to vector<16x1xf32>
    %cst_81 = arith.constant 3.200000e+01 : f32
    %178 = vector.broadcast %cst_81 : f32 to vector<16x1xf32>
    %179 = arith.divf %177, %178 : vector<16x1xf32>
    %180 = vector.broadcast %179 : vector<16x1xf32> to vector<16x32xf32>
    %181 = arith.subf %175, %180 : vector<16x32xf32>
    %182 = arith.mulf %181, %181 : vector<16x32xf32>
    %cst_82 = arith.constant dense<0.000000e+00> : vector<16xf32>
    %183 = vector.multi_reduction <add>, %182, %cst_82 [1] : vector<16x32xf32> to vector<16xf32>
    %184 = vector.shape_cast %183 : vector<16xf32> to vector<16x1xf32>
    %cst_83 = arith.constant 3.200000e+01 : f32
    %185 = vector.broadcast %cst_83 : f32 to vector<16x1xf32>
    %186 = arith.divf %184, %185 : vector<16x1xf32>
    %187 = vector.broadcast %179 : vector<16x1xf32> to vector<16x32xf32>
    %188 = arith.subf %175, %187 : vector<16x32xf32>
    %cst_84 = arith.constant 9.99999996E-13 : f32
    %189 = vector.broadcast %cst_84 : f32 to vector<16x1xf32>
    %190 = arith.addf %186, %189 : vector<16x1xf32>
    %191 = math.rsqrt %190 : vector<16x1xf32>
    %192 = vector.broadcast %191 : vector<16x1xf32> to vector<16x32xf32>
    %193 = arith.mulf %188, %192 : vector<16x32xf32>
    %194 = vector.broadcast %83 : vector<1x32xf32> to vector<16x32xf32>
    %195 = arith.mulf %193, %194 : vector<16x32xf32>
    %196 = vector.broadcast %85 : vector<1x32xf32> to vector<16x32xf32>
    %197 = arith.addf %195, %196 : vector<16x32xf32>
    %c1_85 = arith.constant 1 : index
    %c0_86 = arith.constant 0 : index
    %c0_87 = arith.constant 0 : index
    %198 = vector.load %arg10[%c1_85, %c0_86, %c0_87] : memref<2x32x96xbf16, #tpu.memory_space<vmem>>, vector<1x32x96xbf16>
    %199 = vector.shape_cast %198 : vector<1x32x96xbf16> to vector<32x96xbf16>
    %c1_88 = arith.constant 1 : index
    %c0_89 = arith.constant 0 : index
    %c0_90 = arith.constant 0 : index
    %200 = vector.load %arg11[%c1_88, %c0_89, %c0_90] : memref<2x1x96xf32, #tpu.memory_space<vmem>>, vector<1x1x96xf32>
    %201 = vector.shape_cast %200 : vector<1x1x96xf32> to vector<1x96xf32>
    %c1_91 = arith.constant 1 : index
    %c0_92 = arith.constant 0 : index
    %c0_93 = arith.constant 0 : index
    %202 = vector.load %arg12[%c1_91, %c0_92, %c0_93] : memref<2x32x32xbf16, #tpu.memory_space<vmem>>, vector<1x32x32xbf16>
    %203 = vector.shape_cast %202 : vector<1x32x32xbf16> to vector<32x32xbf16>
    %c1_94 = arith.constant 1 : index
    %c0_95 = arith.constant 0 : index
    %c0_96 = arith.constant 0 : index
    %204 = vector.load %arg13[%c1_94, %c0_95, %c0_96] : memref<2x1x32xf32, #tpu.memory_space<vmem>>, vector<1x1x32xf32>
    %205 = vector.shape_cast %204 : vector<1x1x32xf32> to vector<1x32xf32>
    %c1_97 = arith.constant 1 : index
    %c0_98 = arith.constant 0 : index
    %c0_99 = arith.constant 0 : index
    %206 = vector.load %arg14[%c1_97, %c0_98, %c0_99] : memref<2x1x32xf32, #tpu.memory_space<vmem>>, vector<1x1x32xf32>
    %207 = vector.shape_cast %206 : vector<1x1x32xf32> to vector<1x32xf32>
    %c1_100 = arith.constant 1 : index
    %c0_101 = arith.constant 0 : index
    %c0_102 = arith.constant 0 : index
    %208 = vector.load %arg15[%c1_100, %c0_101, %c0_102] : memref<2x1x32xf32, #tpu.memory_space<vmem>>, vector<1x1x32xf32>
    %209 = vector.shape_cast %208 : vector<1x1x32xf32> to vector<1x32xf32>
    %c1_103 = arith.constant 1 : index
    %c0_104 = arith.constant 0 : index
    %c0_105 = arith.constant 0 : index
    %210 = vector.load %arg16[%c1_103, %c0_104, %c0_105] : memref<2x32x64xbf16, #tpu.memory_space<vmem>>, vector<1x32x64xbf16>
    %211 = vector.shape_cast %210 : vector<1x32x64xbf16> to vector<32x64xbf16>
    %c1_106 = arith.constant 1 : index
    %c0_107 = arith.constant 0 : index
    %c0_108 = arith.constant 0 : index
    %212 = vector.load %arg17[%c1_106, %c0_107, %c0_108] : memref<2x1x64xf32, #tpu.memory_space<vmem>>, vector<1x1x64xf32>
    %213 = vector.shape_cast %212 : vector<1x1x64xf32> to vector<1x64xf32>
    %c1_109 = arith.constant 1 : index
    %c0_110 = arith.constant 0 : index
    %c0_111 = arith.constant 0 : index
    %214 = vector.load %arg18[%c1_109, %c0_110, %c0_111] : memref<2x64x32xbf16, #tpu.memory_space<vmem>>, vector<1x64x32xbf16>
    %215 = vector.shape_cast %214 : vector<1x64x32xbf16> to vector<64x32xbf16>
    %c1_112 = arith.constant 1 : index
    %c0_113 = arith.constant 0 : index
    %c0_114 = arith.constant 0 : index
    %216 = vector.load %arg19[%c1_112, %c0_113, %c0_114] : memref<2x1x32xf32, #tpu.memory_space<vmem>>, vector<1x1x32xf32>
    %217 = vector.shape_cast %216 : vector<1x1x32xf32> to vector<1x32xf32>
    %c1_115 = arith.constant 1 : index
    %c0_116 = arith.constant 0 : index
    %c0_117 = arith.constant 0 : index
    %218 = vector.load %arg20[%c1_115, %c0_116, %c0_117] : memref<2x1x32xf32, #tpu.memory_space<vmem>>, vector<1x1x32xf32>
    %219 = vector.shape_cast %218 : vector<1x1x32xf32> to vector<1x32xf32>
    %c1_118 = arith.constant 1 : index
    %c0_119 = arith.constant 0 : index
    %c0_120 = arith.constant 0 : index
    %220 = vector.load %arg21[%c1_118, %c0_119, %c0_120] : memref<2x1x32xf32, #tpu.memory_space<vmem>>, vector<1x1x32xf32>
    %221 = vector.shape_cast %220 : vector<1x1x32xf32> to vector<1x32xf32>
    %222 = arith.truncf %197 : vector<16x32xf32> to vector<16x32xbf16>
    %cst_121 = arith.constant dense<0.000000e+00> : vector<16x96xf32>
    %223 = tpu.matmul %222, %199, %cst_121 {dimension_numbers = #tpu.dot_dimension_numbers<[1], [0], [0], [1], [0, 0, 1, 1], [], []>} : vector<16x32xbf16>, vector<32x96xbf16>, vector<16x96xf32> -> vector<16x96xf32>
    %224 = vector.broadcast %201 : vector<1x96xf32> to vector<16x96xf32>
    %225 = arith.addf %223, %224 : vector<16x96xf32>
    %226 = vector.extract_strided_slice %225 {offsets = [0, 0], sizes = [16, 16], strides = [1, 1]} : vector<16x96xf32> to vector<16x16xf32>
    %227 = vector.shape_cast %226 : vector<16x16xf32> to vector<2x8x16xf32>
    %228 = vector.extract_strided_slice %225 {offsets = [0, 16], sizes = [16, 16], strides = [1, 1]} : vector<16x96xf32> to vector<16x16xf32>
    %229 = vector.shape_cast %228 : vector<16x16xf32> to vector<2x8x16xf32>
    %230 = tpu.concatenate %227, %229 in 0 : vector<2x8x16xf32>, vector<2x8x16xf32> -> vector<4x8x16xf32>
    %231 = arith.truncf %230 : vector<4x8x16xf32> to vector<4x8x16xbf16>
    %232 = vector.extract_strided_slice %225 {offsets = [0, 32], sizes = [16, 16], strides = [1, 1]} : vector<16x96xf32> to vector<16x16xf32>
    %233 = vector.shape_cast %232 : vector<16x16xf32> to vector<2x8x16xf32>
    %234 = vector.extract_strided_slice %225 {offsets = [0, 48], sizes = [16, 16], strides = [1, 1]} : vector<16x96xf32> to vector<16x16xf32>
    %235 = vector.shape_cast %234 : vector<16x16xf32> to vector<2x8x16xf32>
    %236 = tpu.concatenate %233, %235 in 0 : vector<2x8x16xf32>, vector<2x8x16xf32> -> vector<4x8x16xf32>
    %237 = arith.truncf %236 : vector<4x8x16xf32> to vector<4x8x16xbf16>
    %238 = vector.extract_strided_slice %225 {offsets = [0, 64], sizes = [16, 16], strides = [1, 1]} : vector<16x96xf32> to vector<16x16xf32>
    %239 = vector.shape_cast %238 : vector<16x16xf32> to vector<2x8x16xf32>
    %240 = vector.extract_strided_slice %225 {offsets = [0, 80], sizes = [16, 16], strides = [1, 1]} : vector<16x96xf32> to vector<16x16xf32>
    %241 = vector.shape_cast %240 : vector<16x16xf32> to vector<2x8x16xf32>
    %242 = tpu.concatenate %239, %241 in 0 : vector<2x8x16xf32>, vector<2x8x16xf32> -> vector<4x8x16xf32>
    %243 = arith.truncf %242 : vector<4x8x16xf32> to vector<4x8x16xbf16>
    "tpu.trace_start"() <{level = 10 : i32, message = "bqd,bkd->bqk"}> : () -> ()
    %cst_122 = arith.constant dense<0.000000e+00> : vector<4x8x8xf32>
    %244 = tpu.matmul %231, %237, %cst_122 {dimension_numbers = #tpu.dot_dimension_numbers<[2], [2], [1], [1], [0, 0, 0, 1, 1, 1], [0], [0]>} : vector<4x8x16xbf16>, vector<4x8x16xbf16>, vector<4x8x8xf32> -> vector<4x8x8xf32>
    "tpu.trace_stop"() : () -> ()
    %245 = arith.addf %244, %61 : vector<4x8x8xf32>
    %cst_123 = arith.constant dense<0xFF800000> : vector<4x8xf32>
    %246 = vector.multi_reduction <maximumf>, %245, %cst_123 [2] : vector<4x8x8xf32> to vector<4x8xf32>
    %247 = vector.shape_cast %246 : vector<4x8xf32> to vector<4x8x1xf32>
    %248 = vector.broadcast %247 : vector<4x8x1xf32> to vector<4x8x8xf32>
    %249 = arith.subf %245, %248 : vector<4x8x8xf32>
    %250 = math.exp %249 : vector<4x8x8xf32>
    %cst_124 = arith.constant dense<0.000000e+00> : vector<4x8xf32>
    %251 = vector.multi_reduction <add>, %250, %cst_124 [2] : vector<4x8x8xf32> to vector<4x8xf32>
    %252 = vector.shape_cast %251 : vector<4x8xf32> to vector<4x8x1xf32>
    %253 = tpu.reciprocal %252 {approx = true} : vector<4x8x1xf32> -> vector<4x8x1xf32>
    %254 = vector.broadcast %253 : vector<4x8x1xf32> to vector<4x8x8xf32>
    %255 = arith.mulf %250, %254 : vector<4x8x8xf32>
    %256 = arith.truncf %255 : vector<4x8x8xf32> to vector<4x8x8xbf16>
    "tpu.trace_start"() <{level = 10 : i32, message = "bqk,bkd->bqd"}> : () -> ()
    %cst_125 = arith.constant dense<0.000000e+00> : vector<4x8x16xf32>
    %257 = tpu.matmul %256, %243, %cst_125 {dimension_numbers = #tpu.dot_dimension_numbers<[2], [1], [1], [2], [0, 0, 0, 1, 1, 2], [0], [0]>} : vector<4x8x8xbf16>, vector<4x8x16xbf16>, vector<4x8x16xf32> -> vector<4x8x16xf32>
    "tpu.trace_stop"() : () -> ()
    %258 = vector.extract_strided_slice %257 {offsets = [0, 0, 0], sizes = [2, 8, 16], strides = [1, 1, 1]} : vector<4x8x16xf32> to vector<2x8x16xf32>
    %259 = vector.shape_cast %258 : vector<2x8x16xf32> to vector<16x16xf32>
    %260 = vector.extract_strided_slice %257 {offsets = [2, 0, 0], sizes = [2, 8, 16], strides = [1, 1, 1]} : vector<4x8x16xf32> to vector<2x8x16xf32>
    %261 = vector.shape_cast %260 : vector<2x8x16xf32> to vector<16x16xf32>
    %262 = tpu.concatenate %259, %261 in 1 : vector<16x16xf32>, vector<16x16xf32> -> vector<16x32xf32>
    %263 = arith.truncf %262 : vector<16x32xf32> to vector<16x32xbf16>
    %cst_126 = arith.constant dense<0.000000e+00> : vector<16x32xf32>
    %264 = tpu.matmul %263, %203, %cst_126 {dimension_numbers = #tpu.dot_dimension_numbers<[1], [0], [0], [1], [0, 0, 1, 1], [], []>} : vector<16x32xbf16>, vector<32x32xbf16>, vector<16x32xf32> -> vector<16x32xf32>
    %265 = vector.broadcast %205 : vector<1x32xf32> to vector<16x32xf32>
    %266 = arith.addf %264, %265 : vector<16x32xf32>
    %267 = arith.addf %266, %197 : vector<16x32xf32>
    %cst_127 = arith.constant dense<0.000000e+00> : vector<16xf32>
    %268 = vector.multi_reduction <add>, %267, %cst_127 [1] : vector<16x32xf32> to vector<16xf32>
    %269 = vector.shape_cast %268 : vector<16xf32> to vector<16x1xf32>
    %cst_128 = arith.constant 3.200000e+01 : f32
    %270 = vector.broadcast %cst_128 : f32 to vector<16x1xf32>
    %271 = arith.divf %269, %270 : vector<16x1xf32>
    %272 = vector.broadcast %271 : vector<16x1xf32> to vector<16x32xf32>
    %273 = arith.subf %267, %272 : vector<16x32xf32>
    %274 = arith.mulf %273, %273 : vector<16x32xf32>
    %cst_129 = arith.constant dense<0.000000e+00> : vector<16xf32>
    %275 = vector.multi_reduction <add>, %274, %cst_129 [1] : vector<16x32xf32> to vector<16xf32>
    %276 = vector.shape_cast %275 : vector<16xf32> to vector<16x1xf32>
    %cst_130 = arith.constant 3.200000e+01 : f32
    %277 = vector.broadcast %cst_130 : f32 to vector<16x1xf32>
    %278 = arith.divf %276, %277 : vector<16x1xf32>
    %279 = vector.broadcast %271 : vector<16x1xf32> to vector<16x32xf32>
    %280 = arith.subf %267, %279 : vector<16x32xf32>
    %cst_131 = arith.constant 9.99999996E-13 : f32
    %281 = vector.broadcast %cst_131 : f32 to vector<16x1xf32>
    %282 = arith.addf %278, %281 : vector<16x1xf32>
    %283 = math.rsqrt %282 : vector<16x1xf32>
    %284 = vector.broadcast %283 : vector<16x1xf32> to vector<16x32xf32>
    %285 = arith.mulf %280, %284 : vector<16x32xf32>
    %286 = vector.broadcast %207 : vector<1x32xf32> to vector<16x32xf32>
    %287 = arith.mulf %285, %286 : vector<16x32xf32>
    %288 = vector.broadcast %209 : vector<1x32xf32> to vector<16x32xf32>
    %289 = arith.addf %287, %288 : vector<16x32xf32>
    %290 = arith.truncf %289 : vector<16x32xf32> to vector<16x32xbf16>
    %cst_132 = arith.constant dense<0.000000e+00> : vector<16x64xf32>
    %291 = tpu.matmul %290, %211, %cst_132 {dimension_numbers = #tpu.dot_dimension_numbers<[1], [0], [0], [1], [0, 0, 1, 1], [], []>} : vector<16x32xbf16>, vector<32x64xbf16>, vector<16x64xf32> -> vector<16x64xf32>
    %292 = vector.broadcast %213 : vector<1x64xf32> to vector<16x64xf32>
    %293 = arith.addf %291, %292 : vector<16x64xf32>
    %cst_133 = arith.constant 5.000000e-01 : f32
    %294 = vector.broadcast %cst_133 : f32 to vector<16x64xf32>
    %295 = arith.mulf %294, %293 : vector<16x64xf32>
    %cst_134 = arith.constant 4.471500e-02 : f32
    %296 = vector.broadcast %cst_134 : f32 to vector<16x64xf32>
    %297 = arith.mulf %296, %293 : vector<16x64xf32>
    %298 = arith.mulf %297, %293 : vector<16x64xf32>
    %299 = arith.mulf %298, %293 : vector<16x64xf32>
    %300 = arith.addf %293, %299 : vector<16x64xf32>
    %cst_135 = arith.constant 0.797884583 : f32
    %301 = vector.broadcast %cst_135 : f32 to vector<16x64xf32>
    %302 = arith.mulf %301, %300 : vector<16x64xf32>
    %303 = math.tanh %302 : vector<16x64xf32>
    %cst_136 = arith.constant 1.000000e+00 : f32
    %304 = vector.broadcast %cst_136 : f32 to vector<16x64xf32>
    %305 = arith.addf %304, %303 : vector<16x64xf32>
    %306 = arith.mulf %295, %305 : vector<16x64xf32>
    %307 = arith.truncf %306 : vector<16x64xf32> to vector<16x64xbf16>
    %cst_137 = arith.constant dense<0.000000e+00> : vector<16x32xf32>
    %308 = tpu.matmul %307, %215, %cst_137 {dimension_numbers = #tpu.dot_dimension_numbers<[1], [0], [0], [1], [0, 0, 1, 1], [], []>} : vector<16x64xbf16>, vector<64x32xbf16>, vector<16x32xf32> -> vector<16x32xf32>
    %309 = vector.broadcast %217 : vector<1x32xf32> to vector<16x32xf32>
    %310 = arith.addf %308, %309 : vector<16x32xf32>
    %311 = arith.addf %310, %289 : vector<16x32xf32>
    %cst_138 = arith.constant dense<0.000000e+00> : vector<16xf32>
    %312 = vector.multi_reduction <add>, %311, %cst_138 [1] : vector<16x32xf32> to vector<16xf32>
    %313 = vector.shape_cast %312 : vector<16xf32> to vector<16x1xf32>
    %cst_139 = arith.constant 3.200000e+01 : f32
    %314 = vector.broadcast %cst_139 : f32 to vector<16x1xf32>
    %315 = arith.divf %313, %314 : vector<16x1xf32>
    %316 = vector.broadcast %315 : vector<16x1xf32> to vector<16x32xf32>
    %317 = arith.subf %311, %316 : vector<16x32xf32>
    %318 = arith.mulf %317, %317 : vector<16x32xf32>
    %cst_140 = arith.constant dense<0.000000e+00> : vector<16xf32>
    %319 = vector.multi_reduction <add>, %318, %cst_140 [1] : vector<16x32xf32> to vector<16xf32>
    %320 = vector.shape_cast %319 : vector<16xf32> to vector<16x1xf32>
    %cst_141 = arith.constant 3.200000e+01 : f32
    %321 = vector.broadcast %cst_141 : f32 to vector<16x1xf32>
    %322 = arith.divf %320, %321 : vector<16x1xf32>
    %323 = vector.broadcast %315 : vector<16x1xf32> to vector<16x32xf32>
    %324 = arith.subf %311, %323 : vector<16x32xf32>
    %cst_142 = arith.constant 9.99999996E-13 : f32
    %325 = vector.broadcast %cst_142 : f32 to vector<16x1xf32>
    %326 = arith.addf %322, %325 : vector<16x1xf32>
    %327 = math.rsqrt %326 : vector<16x1xf32>
    %328 = vector.broadcast %327 : vector<16x1xf32> to vector<16x32xf32>
    %329 = arith.mulf %324, %328 : vector<16x32xf32>
    %330 = vector.broadcast %219 : vector<1x32xf32> to vector<16x32xf32>
    %331 = arith.mulf %329, %330 : vector<16x32xf32>
    %332 = vector.broadcast %221 : vector<1x32xf32> to vector<16x32xf32>
    %333 = arith.addf %331, %332 : vector<16x32xf32>
    %c0_143 = arith.constant 0 : index
    %c0_144 = arith.constant 0 : index
    %334 = vector.load %arg28[%c0_143, %c0_144] : memref<16x32xf32, #tpu.memory_space<vmem>>, vector<16x32xf32>
    tpu.vector_store %arg28[%c0_143, %c0_144], %333 {strides = array<i32>} : memref<16x32xf32, #tpu.memory_space<vmem>>, vector<16x32xf32>,
    %c0_145 = arith.constant 0 : index
    %c0_146 = arith.constant 0 : index
    %335 = vector.load %arg22[%c0_145, %c0_146] : memref<32x32xf32, #tpu.memory_space<vmem>>, vector<32x32xf32>
    %cst_147 = arith.constant dense<0.000000e+00> : vector<16x32xf32>
    %336 = tpu.matmul %333, %335, %cst_147 {dimension_numbers = #tpu.dot_dimension_numbers<[1], [0], [0], [1], [0, 0, 1, 1], [], []>} : vector<16x32xf32>, vector<32x32xf32>, vector<16x32xf32> -> vector<16x32xf32>
    %c0_148 = arith.constant 0 : index
    %c0_149 = arith.constant 0 : index
    %337 = vector.load %arg23[%c0_148, %c0_149] : memref<1x32xf32, #tpu.memory_space<vmem>>, vector<1x32xf32>
    %338 = vector.broadcast %337 : vector<1x32xf32> to vector<16x32xf32>
    %339 = arith.addf %336, %338 : vector<16x32xf32>
    %cst_150 = arith.constant 5.000000e-01 : f32
    %340 = vector.broadcast %cst_150 : f32 to vector<16x32xf32>
    %341 = arith.mulf %340, %339 : vector<16x32xf32>
    %cst_151 = arith.constant 4.471500e-02 : f32
    %342 = vector.broadcast %cst_151 : f32 to vector<16x32xf32>
    %343 = arith.mulf %342, %339 : vector<16x32xf32>
    %344 = arith.mulf %343, %339 : vector<16x32xf32>
    %345 = arith.mulf %344, %339 : vector<16x32xf32>
    %346 = arith.addf %339, %345 : vector<16x32xf32>
    %cst_152 = arith.constant 0.797884583 : f32
    %347 = vector.broadcast %cst_152 : f32 to vector<16x32xf32>
    %348 = arith.mulf %347, %346 : vector<16x32xf32>
    %349 = math.tanh %348 : vector<16x32xf32>
    %cst_153 = arith.constant 1.000000e+00 : f32
    %350 = vector.broadcast %cst_153 : f32 to vector<16x32xf32>
    %351 = arith.addf %350, %349 : vector<16x32xf32>
    %352 = arith.mulf %341, %351 : vector<16x32xf32>
    %c0_154 = arith.constant 0 : index
    %c0_155 = arith.constant 0 : index
    %353 = vector.load %arg24[%c0_154, %c0_155] : memref<1x32xf32, #tpu.memory_space<vmem>>, vector<1x32xf32>
    %c0_156 = arith.constant 0 : index
    %c0_157 = arith.constant 0 : index
    %354 = vector.load %arg25[%c0_156, %c0_157] : memref<1x32xf32, #tpu.memory_space<vmem>>, vector<1x32xf32>
    %cst_158 = arith.constant dense<0.000000e+00> : vector<16xf32>
    %355 = vector.multi_reduction <add>, %352, %cst_158 [1] : vector<16x32xf32> to vector<16xf32>
    %356 = vector.shape_cast %355 : vector<16xf32> to vector<16x1xf32>
    %cst_159 = arith.constant 3.200000e+01 : f32
    %357 = vector.broadcast %cst_159 : f32 to vector<16x1xf32>
    %358 = arith.divf %356, %357 : vector<16x1xf32>
    %359 = vector.broadcast %358 : vector<16x1xf32> to vector<16x32xf32>
    %360 = arith.subf %352, %359 : vector<16x32xf32>
    %361 = arith.mulf %360, %360 : vector<16x32xf32>
    %cst_160 = arith.constant dense<0.000000e+00> : vector<16xf32>
    %362 = vector.multi_reduction <add>, %361, %cst_160 [1] : vector<16x32xf32> to vector<16xf32>
    %363 = vector.shape_cast %362 : vector<16xf32> to vector<16x1xf32>
    %cst_161 = arith.constant 3.200000e+01 : f32
    %364 = vector.broadcast %cst_161 : f32 to vector<16x1xf32>
    %365 = arith.divf %363, %364 : vector<16x1xf32>
    %366 = vector.broadcast %358 : vector<16x1xf32> to vector<16x32xf32>
    %367 = arith.subf %352, %366 : vector<16x32xf32>
    %cst_162 = arith.constant 9.99999996E-13 : f32
    %368 = vector.broadcast %cst_162 : f32 to vector<16x1xf32>
    %369 = arith.addf %365, %368 : vector<16x1xf32>
    %370 = math.rsqrt %369 : vector<16x1xf32>
    %371 = vector.broadcast %370 : vector<16x1xf32> to vector<16x32xf32>
    %372 = arith.mulf %367, %371 : vector<16x32xf32>
    %373 = vector.broadcast %353 : vector<1x32xf32> to vector<16x32xf32>
    %374 = arith.mulf %372, %373 : vector<16x32xf32>
    %375 = vector.broadcast %354 : vector<1x32xf32> to vector<16x32xf32>
    %376 = arith.addf %374, %375 : vector<16x32xf32>
    %c0_163 = arith.constant 0 : index
    %c0_164 = arith.constant 0 : index
    %377 = vector.load %arg26[%c0_163, %c0_164] : memref<32x128xf32, #tpu.memory_space<vmem>>, vector<32x128xf32>
    %cst_165 = arith.constant dense<0.000000e+00> : vector<16x128xf32>
    %378 = tpu.matmul %376, %377, %cst_165 {dimension_numbers = #tpu.dot_dimension_numbers<[1], [0], [0], [1], [0, 0, 1, 1], [], []>} : vector<16x32xf32>, vector<32x128xf32>, vector<16x128xf32> -> vector<16x128xf32>
    %c0_166 = arith.constant 0 : index
    %c0_167 = arith.constant 0 : index
    %379 = vector.load %arg27[%c0_166, %c0_167] : memref<1x128xf32, #tpu.memory_space<vmem>>, vector<1x128xf32>
    %380 = vector.broadcast %379 : vector<1x128xf32> to vector<16x128xf32>
    %381 = arith.addf %378, %380 : vector<16x128xf32>
    %c0_168 = arith.constant 0 : index
    %c0_169 = arith.constant 0 : index
    %382 = vector.load %arg29[%c0_168, %c0_169] : memref<16x128xf32, #tpu.memory_space<vmem>>, vector<16x128xf32>
    tpu.vector_store %arg29[%c0_168, %c0_169], %381 {strides = array<i32>} : memref<16x128xf32, #tpu.memory_space<vmem>>, vector<16x128xf32>,
    %c0_170 = arith.constant 0 : index
    %c0_171 = arith.constant 0 : index
    %383 = vector.load %arg4[%c0_170, %c0_171] : memref<16x1xi32, #tpu.memory_space<vmem>>, vector<16x1xi32>
    %cst_172 = arith.constant dense<0xFF800000> : vector<16xf32>
    %384 = vector.multi_reduction <maximumf>, %381, %cst_172 [1] : vector<16x128xf32> to vector<16xf32>
    %385 = vector.shape_cast %384 : vector<16xf32> to vector<16x1xf32>
    %386 = vector.broadcast %385 : vector<16x1xf32> to vector<16x128xf32>
    %387 = arith.subf %381, %386 : vector<16x128xf32>
    %388 = math.exp %387 : vector<16x128xf32>
    %cst_173 = arith.constant dense<0.000000e+00> : vector<16xf32>
    %389 = vector.multi_reduction <add>, %388, %cst_173 [1] : vector<16x128xf32> to vector<16xf32>
    %390 = vector.shape_cast %389 : vector<16xf32> to vector<16x1xf32>
    %391 = math.log %390 : vector<16x1xf32>
    %392 = arith.addf %391, %385 : vector<16x1xf32>
    %393 = tpu.iota {dimensions = array<i32: 1>} : vector<16x128xi32>
    %394 = vector.broadcast %383 : vector<16x1xi32> to vector<16x128xi32>
    %395 = arith.cmpi eq, %393, %394 : vector<16x128xi32>
    %396 = arith.extui %395 : vector<16x128xi1> to vector<16x128xi32>
    %397 = arith.sitofp %396 : vector<16x128xi32> to vector<16x128xf32>
    %398 = arith.mulf %381, %397 : vector<16x128xf32>
    %cst_174 = arith.constant dense<0.000000e+00> : vector<16xf32>
    %399 = vector.multi_reduction <add>, %398, %cst_174 [1] : vector<16x128xf32> to vector<16xf32>
    %400 = vector.shape_cast %399 : vector<16xf32> to vector<16x1xf32>
    %c-100_i32 = arith.constant -100 : i32
    %401 = vector.broadcast %c-100_i32 : i32 to vector<16x1xi32>
    %402 = arith.cmpi ne, %383, %401 : vector<16x1xi32>
    %403 = arith.extui %402 : vector<16x1xi1> to vector<16x1xi32>
    %404 = arith.sitofp %403 : vector<16x1xi32> to vector<16x1xf32>
    %405 = arith.subf %392, %400 : vector<16x1xf32>
    %406 = arith.mulf %405, %404 : vector<16x1xf32>
    %407 = vector.shape_cast %406 : vector<16x1xf32> to vector<1x16x1xf32>
    %cst_175 = arith.constant dense<0.000000e+00> : vector<1xf32>
    %408 = vector.multi_reduction <add>, %407, %cst_175 [1, 2] : vector<1x16x1xf32> to vector<1xf32>
    %409 = vector.shape_cast %408 : vector<1xf32> to vector<1x1x1xf32>
    %410 = vector.extract %409[0, 0, 0] : f32 from vector<1x1x1xf32>
    %411 = vector.shape_cast %404 : vector<16x1xf32> to vector<1x16x1xf32>
    %cst_176 = arith.constant dense<0.000000e+00> : vector<1xf32>
    %412 = vector.multi_reduction <add>, %411, %cst_176 [1, 2] : vector<1x16x1xf32> to vector<1xf32>
    %413 = vector.shape_cast %412 : vector<1xf32> to vector<1x1x1xf32>
    %414 = vector.extract %413[0, 0, 0] : f32 from vector<1x1x1xf32>
    %415 = arith.divf %410, %414 : f32
    %c0_177 = arith.constant 0 : index
    %c0_178 = arith.constant 0 : index
    %416 = memref.load %arg30[%c0_177, %c0_178] : memref<1x1xf32, #tpu.memory_space<smem>>
    memref.store %415, %arg30[%c0_177, %c0_178] : memref<1x1xf32, #tpu.memory_space<smem>>
    return
  }
}

</mosaic_0001>

<llo_original>
// kernel: task_model_forward.1
$region0: #{task_model_forward.1}
  #allocation0 [shape = 'u32[]', space=smem, size = 0x4, offset = 0x4, fixed_abs, tag = 'smem constant byte address 0x4 - core index']
  #allocation1 [shape = 'u32[72,128]{1,0:T(1,128)}', space=vmem, size = 0x9000, scoped, tag = 'internal scratch']
  %s0 = inlined_call_operand.smem [shape: u32[31], index: -1, kind: input, shape index: {}]
  %s1 = sld [smem:[%s0]]
  %s2 = scalar_lea.smem %s0, 1
  %s3 = sld [smem:[%s2]]
  %s4 = scalar_lea.smem %s0, 2
  %s5 = sld [smem:[%s4]]
  %s6 = scalar_lea.smem %s0, 3
  %s7 = sld [smem:[%s6]]
  %s8 = scalar_lea.smem %s0, 4
  %s9 = sld [smem:[%s8]]
  %s10 = scalar_lea.smem %s0, 5
  %s11 = sld [smem:[%s10]]
  %s12 = scalar_lea.smem %s0, 6
  %s13 = sld [smem:[%s12]]
  %s14 = scalar_lea.smem %s0, 7
  %s15 = sld [smem:[%s14]]
  %s16 = scalar_lea.smem %s0, 8
  %s17 = sld [smem:[%s16]]
  %s18 = scalar_lea.smem %s0, 9
  %s19 = sld [smem:[%s18]]
  %s20 = scalar_lea.smem %s0, 10
  %s21 = sld [smem:[%s20]]
  %s22 = scalar_lea.smem %s0, 11
  %s23 = sld [smem:[%s22]]
  %s24 = scalar_lea.smem %s0, 12
  %s25 = sld [smem:[%s24]]
  %s26 = scalar_lea.smem %s0, 13
  %s27 = sld [smem:[%s26]]
  %s28 = scalar_lea.smem %s0, 14
  %s29 = sld [smem:[%s28]]
  %s30 = scalar_lea.smem %s0, 15
  %s31 = sld [smem:[%s30]]
  %s32 = scalar_lea.smem %s0, 16
  %s33 = sld [smem:[%s32]]
  %s34 = scalar_lea.smem %s0, 17
  %s35 = sld [smem:[%s34]]
  %s36 = scalar_lea.smem %s0, 18
  %s37 = sld [smem:[%s36]]
  %s38 = scalar_lea.smem %s0, 19
  %s39 = sld [smem:[%s38]]
  %s40 = scalar_lea.smem %s0, 20
  %s41 = sld [smem:[%s40]]
  %s42 = scalar_lea.smem %s0, 21
  %s43 = sld [smem:[%s42]]
  %s44 = scalar_lea.smem %s0, 22
  %s45 = sld [smem:[%s44]]
  %s46 = scalar_lea.smem %s0, 23
  %s47 = sld [smem:[%s46]]
  %s48 = scalar_lea.smem %s0, 24
  %s49 = sld [smem:[%s48]]
  %s50 = scalar_lea.smem %s0, 25
  %s51 = sld [smem:[%s50]]
  %s52 = scalar_lea.smem %s0, 26
  %s53 = sld [smem:[%s52]]
  %s54 = scalar_lea.smem %s0, 27
  %s55 = sld [smem:[%s54]]
  %s56 = scalar_lea.smem %s0, 28
  %s57 = sld [smem:[%s56]]
  %s58 = scalar_lea.smem %s0, 29
  %s59 = sld [smem:[%s58]]
  %s60 = scalar_lea.smem %s0, 30
  %s61 = sld [smem:[%s60]]
  %62 = xla_tuple %s57, %s59, %s61
  %s63 = sld [smem:[#allocation0]]
  $region138: #{task_model_forward.1} parent=0
    _
  %s65 = ssub.s32 1, %s63
  %s66 = scalar_select 0, %s65, %s63
  $region1: #{task_model_forward.1} parent=0
    #allocation2 [shape = 'u8[8192]{0}', space=vmem, size = 0x2000, scoped, tag = 'output window, operand 1, single buffered']
    #allocation3 [shape = 's32[1]{0}', space=sflag, size = 0x4, scoped, tag = 'scoped memory for task_model_forward.1']
    #allocation4 [shape = 's32[1]{0}', space=sflag, size = 0x4, scoped, tag = 'scoped memory for task_model_forward.1']
    #allocation5 [shape = 'u8[512]{0}', space=smem, size = 0x200, scoped, tag = 'output window, operand 2, single buffered']
    %67 = vsyncpa [#allocation3], 0
    %68 = vsyncpa [#allocation4], 0
    // Predicated region
    $region2: #{task_model_forward.1} parent=1 // pred_check
      _
    $region3: #{task_model_forward.1} parent=1 // pred_check_branch
      %70 = sbr.rel (0) target = $region5
    $region4: #{task_model_forward.1} parent=1 // pred_region
      _
    $region5: #{task_model_forward.1} parent=1 // pred_fallthru
      _
    // Predicated region
    $region6: #{task_model_forward.1} parent=1 // pred_check
      _
    $region7: #{task_model_forward.1} parent=1 // pred_check_branch
      %72 = sbr.rel (0) target = $region9
    $region8: #{task_model_forward.1} parent=1 // pred_region
      _
    $region9: #{task_model_forward.1} parent=1 // pred_fallthru
      _
    // Predicated region
    $region10: #{task_model_forward.1} parent=1 // pred_check
      _
    $region11: #{task_model_forward.1} parent=1 // pred_check_branch
      %74 = sbr.rel (0) target = $region13
    $region12: #{task_model_forward.1} parent=1 // pred_region
      _
    $region13: #{task_model_forward.1} parent=1 // pred_fallthru
      _
    // Predicated region
    $region14: #{task_model_forward.1} parent=1 // pred_check
      _
    $region15: #{task_model_forward.1} parent=1 // pred_check_branch
      %76 = sbr.rel (0) target = $region17
    $region16: #{task_model_forward.1} parent=1 // pred_region
      _
    $region17: #{task_model_forward.1} parent=1 // pred_fallthru
      _
    // Predicated region
    $region18: #{task_model_forward.1} parent=1 // pred_check
      _
    $region19: #{task_model_forward.1} parent=1 // pred_check_branch
      %78 = sbr.rel (0) target = $region21
    $region20: #{task_model_forward.1} parent=1 // pred_region
      _
    $region21: #{task_model_forward.1} parent=1 // pred_fallthru
      _
    // Predicated region
    $region22: #{task_model_forward.1} parent=1 // pred_check
      _
    $region23: #{task_model_forward.1} parent=1 // pred_check_branch
      %80 = sbr.rel (0) target = $region25
    $region24: #{task_model_forward.1} parent=1 // pred_region
      _
    $region25: #{task_model_forward.1} parent=1 // pred_fallthru
      _
    // Predicated region
    $region26: #{task_model_forward.1} parent=1 // pred_check
      _
    $region27: #{task_model_forward.1} parent=1 // pred_check_branch
      %82 = sbr.rel (0) target = $region29
    $region28: #{task_model_forward.1} parent=1 // pred_region
      _
    $region29: #{task_model_forward.1} parent=1 // pred_fallthru
      _
    // Predicated region
    $region30: #{task_model_forward.1} parent=1 // pred_check
      _
    $region31: #{task_model_forward.1} parent=1 // pred_check_branch
      %84 = sbr.rel (0) target = $region33
    $region32: #{task_model_forward.1} parent=1 // pred_region
      _
    $region33: #{task_model_forward.1} parent=1 // pred_fallthru
      _
    // Predicated region
    $region34: #{task_model_forward.1} parent=1 // pred_check
      _
    $region35: #{task_model_forward.1} parent=1 // pred_check_branch
      %86 = sbr.rel (0) target = $region37
    $region36: #{task_model_forward.1} parent=1 // pred_region
      _
    $region37: #{task_model_forward.1} parent=1 // pred_fallthru
      _
    // Predicated region
    $region38: #{task_model_forward.1} parent=1 // pred_check
      _
    $region39: #{task_model_forward.1} parent=1 // pred_check_branch
      %88 = sbr.rel (0) target = $region41
    $region40: #{task_model_forward.1} parent=1 // pred_region
      _
    $region41: #{task_model_forward.1} parent=1 // pred_fallthru
      _
    // Predicated region
    $region42: #{task_model_forward.1} parent=1 // pred_check
      _
    $region43: #{task_model_forward.1} parent=1 // pred_check_branch
      %90 = sbr.rel (0) target = $region45
    $region44: #{task_model_forward.1} parent=1 // pred_region
      _
    $region45: #{task_model_forward.1} parent=1 // pred_fallthru
      _
    // Predicated region
    $region46: #{task_model_forward.1} parent=1 // pred_check
      _
    $region47: #{task_model_forward.1} parent=1 // pred_check_branch
      %92 = sbr.rel (0) target = $region49
    $region48: #{task_model_forward.1} parent=1 // pred_region
      _
    $region49: #{task_model_forward.1} parent=1 // pred_fallthru
      _
    // Predicated region
    $region50: #{task_model_forward.1} parent=1 // pred_check
      _
    $region51: #{task_model_forward.1} parent=1 // pred_check_branch
      %94 = sbr.rel (0) target = $region53
    $region52: #{task_model_forward.1} parent=1 // pred_region
      _
    $region53: #{task_model_forward.1} parent=1 // pred_fallthru
      _
    // Predicated region
    $region54: #{task_model_forward.1} parent=1 // pred_check
      _
    $region55: #{task_model_forward.1} parent=1 // pred_check_branch
      %96 = sbr.rel (0) target = $region57
    $region56: #{task_model_forward.1} parent=1 // pred_region
      _
    $region57: #{task_model_forward.1} parent=1 // pred_fallthru
      _
    // Predicated region
    $region58: #{task_model_forward.1} parent=1 // pred_check
      _
    $region59: #{task_model_forward.1} parent=1 // pred_check_branch
      %98 = sbr.rel (0) target = $region61
    $region60: #{task_model_forward.1} parent=1 // pred_region
      _
    $region61: #{task_model_forward.1} parent=1 // pred_fallthru
      _
    // Predicated region
    $region62: #{task_model_forward.1} parent=1 // pred_check
      _
    $region63: #{task_model_forward.1} parent=1 // pred_check_branch
      %100 = sbr.rel (0) target = $region65
    $region64: #{task_model_forward.1} parent=1 // pred_region
      _
    $region65: #{task_model_forward.1} parent=1 // pred_fallthru
      _
    // Predicated region
    $region66: #{task_model_forward.1} parent=1 // pred_check
      _
    $region67: #{task_model_forward.1} parent=1 // pred_check_branch
      %102 = sbr.rel (0) target = $region69
    $region68: #{task_model_forward.1} parent=1 // pred_region
      _
    $region69: #{task_model_forward.1} parent=1 // pred_fallthru
      _
    // Predicated region
    $region70: #{task_model_forward.1} parent=1 // pred_check
      _
    $region71: #{task_model_forward.1} parent=1 // pred_check_branch
      %104 = sbr.rel (0) target = $region73
    $region72: #{task_model_forward.1} parent=1 // pred_region
      _
    $region73: #{task_model_forward.1} parent=1 // pred_fallthru
      _
    // Predicated region
    $region74: #{task_model_forward.1} parent=1 // pred_check
      _
    $region75: #{task_model_forward.1} parent=1 // pred_check_branch
      %106 = sbr.rel (0) target = $region77
    $region76: #{task_model_forward.1} parent=1 // pred_region
      _
    $region77: #{task_model_forward.1} parent=1 // pred_fallthru
      _
    // Predicated region
    $region78: #{task_model_forward.1} parent=1 // pred_check
      _
    $region79: #{task_model_forward.1} parent=1 // pred_check_branch
      %108 = sbr.rel (0) target = $region81
    $region80: #{task_model_forward.1} parent=1 // pred_region
      _
    $region81: #{task_model_forward.1} parent=1 // pred_fallthru
      _
    // Predicated region
    $region82: #{task_model_forward.1} parent=1 // pred_check
      _
    $region83: #{task_model_forward.1} parent=1 // pred_check_branch
      %110 = sbr.rel (0) target = $region85
    $region84: #{task_model_forward.1} parent=1 // pred_region
      _
    $region85: #{task_model_forward.1} parent=1 // pred_fallthru
      _
    // Predicated region
    $region86: #{task_model_forward.1} parent=1 // pred_check
      _
    $region87: #{task_model_forward.1} parent=1 // pred_check_branch
      %112 = sbr.rel (0) target = $region89
    $region88: #{task_model_forward.1} parent=1 // pred_region
      _
    $region89: #{task_model_forward.1} parent=1 // pred_fallthru
      _
    // Predicated region
    $region90: #{task_model_forward.1} parent=1 // pred_check
      _
    $region91: #{task_model_forward.1} parent=1 // pred_check_branch
      %114 = sbr.rel (0) target = $region93
    $region92: #{task_model_forward.1} parent=1 // pred_region
      _
    $region93: #{task_model_forward.1} parent=1 // pred_fallthru
      _
    // Predicated region
    $region94: #{task_model_forward.1} parent=1 // pred_check
      _
    $region95: #{task_model_forward.1} parent=1 // pred_check_branch
      %116 = sbr.rel (0) target = $region97
    $region96: #{task_model_forward.1} parent=1 // pred_region
      _
    $region97: #{task_model_forward.1} parent=1 // pred_fallthru
      _
    // Predicated region
    $region98: #{task_model_forward.1} parent=1 // pred_check
      _
    $region99: #{task_model_forward.1} parent=1 // pred_check_branch
      %118 = sbr.rel (0) target = $region101
    $region100: #{task_model_forward.1} parent=1 // pred_region
      _
    $region101: #{task_model_forward.1} parent=1 // pred_fallthru
      _
    // Predicated region
    $region102: #{task_model_forward.1} parent=1 // pred_check
      _
    $region103: #{task_model_forward.1} parent=1 // pred_check_branch
      %120 = sbr.rel (0) target = $region105
    $region104: #{task_model_forward.1} parent=1 // pred_region
      _
    $region105: #{task_model_forward.1} parent=1 // pred_fallthru
      _
    // Predicated region
    $region106: #{task_model_forward.1} parent=1 // pred_check
      _
    $region107: #{task_model_forward.1} parent=1 // pred_check_branch
      %122 = sbr.rel (0) target = $region109
    $region108: #{task_model_forward.1} parent=1 // pred_region
      _
    $region109: #{task_model_forward.1} parent=1 // pred_fallthru
      _
    // Predicated region
    $region110: #{task_model_forward.1} parent=1 // pred_check
      _
    $region111: #{task_model_forward.1} parent=1 // pred_check_branch
      %124 = sbr.rel (0) target = $region113
    $region112: #{task_model_forward.1} parent=1 // pred_region
      _
    $region113: #{task_model_forward.1} parent=1 // pred_fallthru
      _
    %v126 = vld [vmem:[%s1] sm:$0xff]
    %v127 = vld [vmem:[%s1 + $0x8] sm:$0xff]
    %v128 = vlaneseq
    %v129 = vand.u32 %v128, 127
    %130 = vset.pattern.permute.xlu0 0
    %131 = vperm.xlu0 %130, %v126
    %v132 = vpop.permute.xlu0 %131
    %133 = vset.pattern.permute.xlu0 0
    %134 = vperm.xlu0 %133, %v127
    %v135 = vpop.permute.xlu0 %134
    %vm136 = vcmp.eq.s32.totalorder %v129, %v132
    %vm137 = vcmp.eq.s32.totalorder %v129, %v135
    %v138 = vsel %vm136, 1, 0
    %v139 = vsel %vm137, 1, 0
    %v140 = vcvt.s32.f32 %v138
    %v141 = vcvt.s32.f32 %v139
    %v142 = vld [vmem:[%s11] sm:$0xff]
    %v143 = vld [vmem:[%s11 + $0x8] sm:$0xff]
    %v144 = vld [vmem:[%s11 + $0x10] sm:$0xff]
    %v145 = vld [vmem:[%s11 + $0x18] sm:$0xff]
    %v146 = vld [vmem:[%s11 + $0x20] sm:$0xff]
    %v147 = vld [vmem:[%s11 + $0x28] sm:$0xff]
    %v148 = vld [vmem:[%s11 + $0x30] sm:$0xff]
    %v149 = vld [vmem:[%s11 + $0x38] sm:$0xff]
    %v150 = vld [vmem:[%s11 + $0x40] sm:$0xff]
    %v151 = vld [vmem:[%s11 + $0x48] sm:$0xff]
    %v152 = vld [vmem:[%s11 + $0x50] sm:$0xff]
    %v153 = vld [vmem:[%s11 + $0x58] sm:$0xff]
    %v154 = vld [vmem:[%s11 + $0x60] sm:$0xff]
    %v155 = vld [vmem:[%s11 + $0x68] sm:$0xff]
    %v156 = vld [vmem:[%s11 + $0x70] sm:$0xff]
    %v157 = vld [vmem:[%s11 + $0x78] sm:$0xff]
    %v158 = vld [vmem:[%s3] sm:$0xff]
    %v159 = vld [vmem:[%s3 + $0x8] sm:$0xff]
    %160 = vset.pattern.permute.xlu0 0
    %161 = vperm.xlu0 %160, %v158
    %v162 = vpop.permute.xlu0 %161
    %163 = vset.pattern.permute.xlu0 0
    %164 = vperm.xlu0 %163, %v159
    %v165 = vpop.permute.xlu0 %164
    %vm166 = vcmp.eq.s32.totalorder %v129, %v162
    %vm167 = vcmp.eq.s32.totalorder %v129, %v165
    %v168 = vsel %vm166, 1, 0
    %v169 = vsel %vm167, 1, 0
    %v170 = vcvt.s32.f32 %v168
    %v171 = vcvt.s32.f32 %v169
    %v172 = vld [vmem:[%s13] sm:$0xff]
    %v173 = vld [vmem:[%s13 + $0x8] sm:$0xff]
    %vm174 = vcmask 130048
    %v176 = vsel %vm174, %v170, 0
    %v179 = vsel %vm174, %v171, 0
    %181 = vmatpush.msra.mxu0 0.0
    %182 = vmatpush.msra.mxu0 0.0
    %183 = vmatpush.msra.mxu0 0.0
    %184 = vmatpush.msra.mxu0 0.0
    %185 = vmatpush.msra.mxu0 0.0
    %186 = vmatpush.msra.mxu0 0.0
    %187 = vmatpush.msra.mxu0 0.0
    %188 = vmatpush.msra.mxu0 0.0
    %189 = vmatpush.msra.mxu0 0.0
    %190 = vmatpush.msra.mxu0 0.0
    %191 = vmatpush.msra.mxu0 0.0
    %192 = vmatpush.msra.mxu0 0.0
    %193 = vmatpush.msra.mxu0 0.0
    %194 = vmatpush.msra.mxu0 0.0
    %195 = vmatpush.msra.mxu0 %v173
    %196 = vmatpush.msra.mxu0 %v172
    %197 = vmatmul.f32.gmra.mxu0 %v176
    %v198 = vpop.f32.mrf.mxu0
    %v199 = vadd.f32 0.0, %v198
    %200 = vmatmul.f32.gmra.mxu0 %v179
    %v201 = vpop.f32.mrf.mxu0
    %v202 = vadd.f32 0.0, %v201
    %203 = vdwg.mxu0
    %204 = vmatpush.msra.mxu0 %v157
    %205 = vmatpush.msra.mxu0 %v156
    %206 = vmatpush.msra.mxu0 %v155
    %207 = vmatpush.msra.mxu0 %v154
    %208 = vmatpush.msra.mxu0 %v153
    %209 = vmatpush.msra.mxu0 %v152
    %210 = vmatpush.msra.mxu0 %v151
    %211 = vmatpush.msra.mxu0 %v150
    %212 = vmatpush.msra.mxu0 %v149
    %213 = vmatpush.msra.mxu0 %v148
    %214 = vmatpush.msra.mxu0 %v147
    %215 = vmatpush.msra.mxu0 %v146
    %216 = vmatpush.msra.mxu0 %v145
    %217 = vmatpush.msra.mxu0 %v144
    %218 = vmatpush.msra.mxu0 %v143
    %219 = vmatpush.msra.mxu0 %v142
    %220 = vmatmul.f32.gmra.mxu0 %v140
    %v221 = vpop.f32.mrf.mxu0
    %v222 = vadd.f32 %v199, %v221
    %223 = vmatmul.f32.gmra.mxu0 %v141
    %v224 = vpop.f32.mrf.mxu0
    %v225 = vadd.f32 %v202, %v224
    %226 = vdwg.mxu0
    %v227 = vld [vmem:[%s5] sm:$0xff]
    %v228 = vld [vmem:[%s5 + $0x8] sm:$0xff]
    %vm229 = vcmp.eq.s32.totalorder %v227, 0
    %vm230 = vcmp.eq.s32.totalorder %v228, 0
    %v231 = vld [vmem:[%s15] sm:$0x1]
    %v232 = vld [vmem:[%s15 + $0x1] sm:$0x1]
    %v233 = vsel %vm229, 1, 0
    %v234 = vsel %vm230, 1, 0
    %235 = vset.pattern.permute.xlu0 0
    %236 = vperm.xlu0 %235, %v233
    %v237 = vpop.permute.xlu0 %236
    %238 = vset.pattern.permute.xlu0 0
    %239 = vperm.xlu0 %238, %v234
    %v240 = vpop.permute.xlu0 %239
    %vm241 = vcmp.eq.s32.totalorder %v237, 1
    %vm242 = vcmp.eq.s32.totalorder %v240, 1
    %v243 = vperm.slane %v231, 0
    %v244 = vperm.slane %v232, 0
    %v245 = vsel %vm241, %v243, %v244
    %v246 = vsel %vm242, %v243, %v244
    %v247 = vadd.f32 %v222, %v245
    %v248 = vadd.f32 %v225, %v246
    %v249 = vld [vmem:[%s17] sm:$0x1]
    %v250 = vld [vmem:[%s19] sm:$0x1]
    %vm251 = vcmask 261120
    %v252 = vsel %vm251, %v247, 0.0
    %253 = vadd.xlane.f32.xlu0 %v252
    %v254 = vpop.xlane.xlu0 %253
    %v255 = vsel %vm251, %v248, 0.0
    %256 = vadd.xlane.f32.xlu0 %v255
    %v257 = vpop.xlane.xlu0 %256
    %v258 = vrcp.pop 32.0
    %v259 = vmul.f32 32.0, %v258
    %v260 = vsub.f32 1.0, %v259
    %v261 = vmul.f32 %v258, %v260
    %v262 = vadd.f32 %v258, %v261
    %vm263 = vweird.f32 %v258
    %v264 = vsel %vm263, %v258, %v262
    %v265 = vmul.f32 %v254, %v264
    %v266 = vmul.f32 %v257, %v264
    %v267 = vsub.f32 %v247, %v265
    %v268 = vsub.f32 %v248, %v266
    %v269 = vmul.f32 %v267, %v267
    %v270 = vmul.f32 %v268, %v268
    %v271 = vsel %vm251, %v269, 0.0
    %272 = vadd.xlane.f32.xlu0 %v271
    %v273 = vpop.xlane.xlu0 %272
    %v274 = vsel %vm251, %v270, 0.0
    %275 = vadd.xlane.f32.xlu0 %v274
    %v276 = vpop.xlane.xlu0 %275
    %v277 = vmul.f32 %v273, %v264
    %v278 = vmul.f32 %v276, %v264
    %v279 = vadd.f32 %v277, 1e-12
    %v280 = vadd.f32 %v278, 1e-12
    %v281 = vrsqrt.pop %v279
    %v282 = vmul.f32 %v281, %v279
    %v283 = vmul.f32 %v282, %v281
    %v284 = vmul.f32 0.5, %v283
    %v285 = vsub.f32 1.5, %v284
    %v286 = vmul.f32 %v281, %v285
    %vm287 = vweird.f32 %v279
    %vm288 = vweird.f32 %v281
    %vm289 = vmor %vm287, %vm288
    %v290 = vsel %vm289, %v281, %v286
    %v291 = vrsqrt.pop %v280
    %v292 = vmul.f32 %v291, %v280
    %v293 = vmul.f32 %v292, %v291
    %v294 = vmul.f32 0.5, %v293
    %v295 = vsub.f32 1.5, %v294
    %v296 = vmul.f32 %v291, %v295
    %vm297 = vweird.f32 %v280
    %vm298 = vweird.f32 %v291
    %vm299 = vmor %vm297, %vm298
    %v300 = vsel %vm299, %v291, %v296
    %v301 = vmul.f32 %v267, %v290
    %v302 = vmul.f32 %v268, %v300
    %v304 = vperm.slane %v249, 0
    %v306 = vmul.f32 %v301, %v304
    %v307 = vmul.f32 %v302, %v304
    %v309 = vperm.slane %v250, 0
    %v311 = vadd.f32 %v306, %v309
    %v312 = vadd.f32 %v307, %v309
    %v313 = vld [vmem:[%s7] sm:$0x1]
    %v314 = vld [vmem:[%s7 + $0x1] sm:$0x1]
    %v315 = vsub.f32 1.0, %v313
    %v316 = vsub.f32 1.0, %v314
    %v317 = vmul.f32 %v315, -1e+09
    %v318 = vmul.f32 %v316, -1e+09
    %v321 = vperm.slane %v317, 0
    %v322 = vperm.slane %v318, 0
    %v325 = vld [vmem:[%s21] sm:$0xf]
    %v326 = vld [vmem:[%s21 + $0x4] sm:$0xf]
    %v327 = vld [vmem:[%s21 + $0x8] sm:$0xf]
    %v328 = vld [vmem:[%s21 + $0xc] sm:$0xf]
    %v329 = vld [vmem:[%s23] sm:$0x1]
    %v330 = vld [vmem:[%s25] sm:$0xf]
    %v331 = vld [vmem:[%s25 + $0x4] sm:$0xf]
    %v332 = vld [vmem:[%s25 + $0x8] sm:$0xf]
    %v333 = vld [vmem:[%s25 + $0xc] sm:$0xf]
    %v334 = vld [vmem:[%s27] sm:$0x1]
    %v335 = vld [vmem:[%s29] sm:$0x1]
    %v336 = vld [vmem:[%s31] sm:$0x1]
    %v337 = vld [vmem:[%s33] sm:$0xf]
    %v338 = vld [vmem:[%s33 + $0x4] sm:$0xf]
    %v339 = vld [vmem:[%s33 + $0x8] sm:$0xf]
    %v340 = vld [vmem:[%s33 + $0xc] sm:$0xf]
    %v341 = vld [vmem:[%s35] sm:$0x1]
    %v342 = vld [vmem:[%s37] sm:$0xf]
    %v343 = vld [vmem:[%s37 + $0x4] sm:$0xf]
    %v344 = vld [vmem:[%s37 + $0x8] sm:$0xf]
    %v345 = vld [vmem:[%s37 + $0xc] sm:$0xf]
    %v346 = vld [vmem:[%s37 + $0x10] sm:$0xf]
    %v347 = vld [vmem:[%s37 + $0x14] sm:$0xf]
    %v348 = vld [vmem:[%s37 + $0x18] sm:$0xf]
    %v349 = vld [vmem:[%s37 + $0x1c] sm:$0xf]
    %v350 = vld [vmem:[%s39] sm:$0x1]
    %v351 = vld [vmem:[%s41] sm:$0x1]
    %v352 = vld [vmem:[%s43] sm:$0x1]
    %v353 = vpack.c.bf16 %v312, %v311
    %v355 = vperm.slane %v329, 0
    %v361 = vunpack.c.l.b16 %v325
    %v362 = vunpack.c.l.b16 %v326
    %v363 = vunpack.c.l.b16 %v327
    %v364 = vunpack.c.l.b16 %v328
    %v365 = vpack.c.b16 %v362, %v361
    %v366 = vpack.c.b16 %v364, %v363
    %v370 = vsel %vm251, %v353, 0
    %372 = vmatpush.bf16.msra.mxu0 0
    %373 = vmatpush.bf16.msra.mxu0 0
    %374 = vmatpush.bf16.msra.mxu0 0
    %375 = vmatpush.bf16.msra.mxu0 0
    %376 = vmatpush.bf16.msra.mxu0 0
    %377 = vmatpush.bf16.msra.mxu0 0
    %378 = vmatpush.bf16.msra.mxu0 %v366
    %379 = vmatpush.bf16.msra.mxu0 %v365
    %380 = vmatmul.bf16.gmra.mxu0 %v370
    %v381 = vpop.f32.mrf.mxu0
    %v382 = vadd.f32 %v355, %v381
    %v383 = vpop.f32.mrf.mxu0
    %v384 = vadd.f32 %v355, %v383
    %385 = vdwg.mxu0
    %388 = vrot.lane.b32.xlu0 %v382, 112
    %v389 = vpop.permute.xlu0 %388
    %390 = vrot.lane.b32.xlu0 %v384, 112
    %v391 = vpop.permute.xlu0 %390
    %v394 = vpack.c.bf16 %v382, %v382
    %v395 = vpack.c.bf16 %v384, %v384
    %v396 = vpack.c.bf16 %v389, %v389
    %v397 = vpack.c.bf16 %v391, %v391
    %v399 = vunpack.c.l.b16 %v394
    %v400 = vpack.c.b16 %v399, %v399
    %401 = vrot.lane.b32.xlu0 %v400, 96
    %v402 = vpop.permute.xlu0 %401
    %v404 = vsel %vm174, %v394, 0
    %v407 = vsel %vm174, %v402, 0
    %409 = vmatpush.bf16.xpose.msra.mxu0 0
    %410 = vmatpush.bf16.xpose.msra.mxu0 0
    %411 = vmatpush.bf16.xpose.msra.mxu0 0
    %412 = vmatpush.bf16.xpose.msra.mxu0 0
    %413 = vmatpush.bf16.xpose.msra.mxu0 0
    %414 = vmatpush.bf16.xpose.msra.mxu0 0
    %415 = vmatpush.bf16.xpose.msra.mxu0 0
    %416 = vmatpush.bf16.xpose.msra.mxu0 %v407
    %417 = vmatmul.bf16.gmra.mxu0 %v404
    %v418 = vpop.f32.mrf.mxu0
    %v419 = vadd.f32 %v321, %v418
    %v420 = vpop.f32.mrf.mxu0
    %421 = vdwg.mxu0
    %v423 = vunpack.c.l.b16 %v395
    %v424 = vpack.c.b16 %v423, %v423
    %425 = vrot.lane.b32.xlu0 %v424, 96
    %v426 = vpop.permute.xlu0 %425
    %v428 = vsel %vm174, %v395, 0
    %v431 = vsel %vm174, %v426, 0
    %433 = vmatpush.bf16.xpose.msra.mxu0 0
    %434 = vmatpush.bf16.xpose.msra.mxu0 0
    %435 = vmatpush.bf16.xpose.msra.mxu0 0
    %436 = vmatpush.bf16.xpose.msra.mxu0 0
    %437 = vmatpush.bf16.xpose.msra.mxu0 0
    %438 = vmatpush.bf16.xpose.msra.mxu0 0
    %439 = vmatpush.bf16.xpose.msra.mxu0 0
    %440 = vmatpush.bf16.xpose.msra.mxu0 %v431
    %441 = vmatmul.bf16.gmra.mxu0 %v428
    %v442 = vpop.f32.mrf.mxu0
    %v443 = vadd.f32 %v322, %v442
    %v444 = vpop.f32.mrf.mxu0
    %445 = vdwg.mxu0
    %v447 = vunpack.c.l.b16 %v396
    %v448 = vpack.c.b16 %v447, %v447
    %449 = vrot.lane.b32.xlu0 %v448, 96
    %v450 = vpop.permute.xlu0 %449
    %v452 = vsel %vm174, %v396, 0
    %v455 = vsel %vm174, %v450, 0
    %457 = vmatpush.bf16.xpose.msra.mxu0 0
    %458 = vmatpush.bf16.xpose.msra.mxu0 0
    %459 = vmatpush.bf16.xpose.msra.mxu0 0
    %460 = vmatpush.bf16.xpose.msra.mxu0 0
    %461 = vmatpush.bf16.xpose.msra.mxu0 0
    %462 = vmatpush.bf16.xpose.msra.mxu0 0
    %463 = vmatpush.bf16.xpose.msra.mxu0 0
    %464 = vmatpush.bf16.xpose.msra.mxu0 %v455
    %465 = vmatmul.bf16.gmra.mxu0 %v452
    %v466 = vpop.f32.mrf.mxu0
    %v467 = vadd.f32 %v321, %v466
    %v468 = vpop.f32.mrf.mxu0
    %469 = vdwg.mxu0
    %v471 = vunpack.c.l.b16 %v397
    %v472 = vpack.c.b16 %v471, %v471
    %473 = vrot.lane.b32.xlu0 %v472, 96
    %v474 = vpop.permute.xlu0 %473
    %v476 = vsel %vm174, %v397, 0
    %v479 = vsel %vm174, %v474, 0
    %481 = vmatpush.bf16.xpose.msra.mxu0 0
    %482 = vmatpush.bf16.xpose.msra.mxu0 0
    %483 = vmatpush.bf16.xpose.msra.mxu0 0
    %484 = vmatpush.bf16.xpose.msra.mxu0 0
    %485 = vmatpush.bf16.xpose.msra.mxu0 0
    %486 = vmatpush.bf16.xpose.msra.mxu0 0
    %487 = vmatpush.bf16.xpose.msra.mxu0 0
    %488 = vmatpush.bf16.xpose.msra.mxu0 %v479
    %489 = vmatmul.bf16.gmra.mxu0 %v476
    %v490 = vpop.f32.mrf.mxu0
    %v491 = vadd.f32 %v322, %v490
    %v492 = vpop.f32.mrf.mxu0
    %493 = vdwg.mxu0
    %vm494 = vcmask 64512
    %v495 = vsel %vm494, %v419, -inf
    %496 = vmax.xlane.f32.xlu0 %v495
    %v497 = vpop.xlane.xlu0 %496
    %v498 = vsel %vm494, %v443, -inf
    %499 = vmax.xlane.f32.xlu0 %v498
    %v500 = vpop.xlane.xlu0 %499
    %v501 = vsel %vm494, %v467, -inf
    %502 = vmax.xlane.f32.xlu0 %v501
    %v503 = vpop.xlane.xlu0 %502
    %v504 = vsel %vm494, %v491, -inf
    %505 = vmax.xlane.f32.xlu0 %v504
    %v506 = vpop.xlane.xlu0 %505
    %v507 = vsub.f32 %v419, %v497
    %v508 = vsub.f32 %v443, %v500
    %v509 = vsub.f32 %v467, %v503
    %v510 = vsub.f32 %v491, %v506
    %v511 = vmul.f32 %v507, 1.442695
    %v512 = vpow.pop %v511
    %v513 = vmul.f32 %v508, 1.442695
    %v514 = vpow.pop %v513
    %v515 = vmul.f32 %v509, 1.442695
    %v516 = vpow.pop %v515
    %v517 = vmul.f32 %v510, 1.442695
    %v518 = vpow.pop %v517
    %v519 = vsel %vm494, %v512, 0.0
    %520 = vadd.xlane.f32.xlu0 %v519
    %v521 = vpop.xlane.xlu0 %520
    %v522 = vsel %vm494, %v514, 0.0
    %523 = vadd.xlane.f32.xlu0 %v522
    %v524 = vpop.xlane.xlu0 %523
    %v525 = vsel %vm494, %v516, 0.0
    %526 = vadd.xlane.f32.xlu0 %v525
    %v527 = vpop.xlane.xlu0 %526
    %v528 = vsel %vm494, %v518, 0.0
    %529 = vadd.xlane.f32.xlu0 %v528
    %v530 = vpop.xlane.xlu0 %529
    %v531 = vrcp.pop %v521
    %v532 = vrcp.pop %v524
    %v533 = vrcp.pop %v527
    %v534 = vrcp.pop %v530
    %v535 = vmul.f32 %v512, %v531
    %v536 = vmul.f32 %v514, %v532
    %v537 = vmul.f32 %v516, %v533
    %v538 = vmul.f32 %v518, %v534
    %v539 = vpack.c.bf16 %v535, %v535
    %v540 = vpack.c.bf16 %v536, %v536
    %v541 = vpack.c.bf16 %v537, %v537
    %v542 = vpack.c.bf16 %v538, %v538
    %543 = vrot.lane.b32.xlu0 %v400, 64
    %v544 = vpop.permute.xlu0 %543
    %v546 = vsel %vm494, %v539, 0
    %vm548 = vcmask 1043456
    %v550 = vsel %vm548, %v544, 0
    %552 = vmatpush.bf16.msra.mxu0 0
    %553 = vmatpush.bf16.msra.mxu0 0
    %554 = vmatpush.bf16.msra.mxu0 0
    %555 = vmatpush.bf16.msra.mxu0 0
    %556 = vmatpush.bf16.msra.mxu0 0
    %557 = vmatpush.bf16.msra.mxu0 0
    %558 = vmatpush.bf16.msra.mxu0 0
    %559 = vmatpush.bf16.msra.mxu0 %v550
    %560 = vmatmul.bf16.gmra.mxu0 %v546
    %v561 = vpop.f32.mrf.mxu0
    %v562 = vadd.f32 0.0, %v561
    %v563 = vpop.f32.mrf.mxu0
    %564 = vdwg.mxu0
    %565 = vrot.lane.b32.xlu0 %v424, 64
    %v566 = vpop.permute.xlu0 %565
    %v568 = vsel %vm494, %v540, 0
    %v571 = vsel %vm548, %v566, 0
    %573 = vmatpush.bf16.msra.mxu0 0
    %574 = vmatpush.bf16.msra.mxu0 0
    %575 = vmatpush.bf16.msra.mxu0 0
    %576 = vmatpush.bf16.msra.mxu0 0
    %577 = vmatpush.bf16.msra.mxu0 0
    %578 = vmatpush.bf16.msra.mxu0 0
    %579 = vmatpush.bf16.msra.mxu0 0
    %580 = vmatpush.bf16.msra.mxu0 %v571
    %581 = vmatmul.bf16.gmra.mxu0 %v568
    %v582 = vpop.f32.mrf.mxu0
    %v583 = vadd.f32 0.0, %v582
    %v584 = vpop.f32.mrf.mxu0
    %585 = vdwg.mxu0
    %586 = vrot.lane.b32.xlu0 %v448, 64
    %v587 = vpop.permute.xlu0 %586
    %v589 = vsel %vm494, %v541, 0
    %v592 = vsel %vm548, %v587, 0
    %594 = vmatpush.bf16.msra.mxu0 0
    %595 = vmatpush.bf16.msra.mxu0 0
    %596 = vmatpush.bf16.msra.mxu0 0
    %597 = vmatpush.bf16.msra.mxu0 0
    %598 = vmatpush.bf16.msra.mxu0 0
    %599 = vmatpush.bf16.msra.mxu0 0
    %600 = vmatpush.bf16.msra.mxu0 0
    %601 = vmatpush.bf16.msra.mxu0 %v592
    %602 = vmatmul.bf16.gmra.mxu0 %v589
    %v603 = vpop.f32.mrf.mxu0
    %v604 = vadd.f32 0.0, %v603
    %v605 = vpop.f32.mrf.mxu0
    %606 = vdwg.mxu0
    %607 = vrot.lane.b32.xlu0 %v472, 64
    %v608 = vpop.permute.xlu0 %607
    %v610 = vsel %vm494, %v542, 0
    %v613 = vsel %vm548, %v608, 0
    %615 = vmatpush.bf16.msra.mxu0 0
    %616 = vmatpush.bf16.msra.mxu0 0
    %617 = vmatpush.bf16.msra.mxu0 0
    %618 = vmatpush.bf16.msra.mxu0 0
    %619 = vmatpush.bf16.msra.mxu0 0
    %620 = vmatpush.bf16.msra.mxu0 0
    %621 = vmatpush.bf16.msra.mxu0 0
    %622 = vmatpush.bf16.msra.mxu0 %v613
    %623 = vmatmul.bf16.gmra.mxu0 %v610
    %v624 = vpop.f32.mrf.mxu0
    %v625 = vadd.f32 0.0, %v624
    %v626 = vpop.f32.mrf.mxu0
    %627 = vdwg.mxu0
    %630 = vrot.lane.b32.xlu0 %v604, 16
    %v631 = vpop.permute.xlu0 %630
    %632 = vrot.lane.b32.xlu0 %v625, 16
    %v633 = vpop.permute.xlu0 %632
    %v636 = vsel %vm174, %v562, %v631
    %v637 = vsel %vm174, %v583, %v633
    %v638 = vpack.c.bf16 %v637, %v636
    %v640 = vperm.slane %v334, 0
    %v646 = vunpack.c.l.b16 %v330
    %v647 = vunpack.c.l.b16 %v331
    %v648 = vunpack.c.l.b16 %v332
    %v649 = vunpack.c.l.b16 %v333
    %v650 = vpack.c.b16 %v647, %v646
    %v651 = vpack.c.b16 %v649, %v648
    %v655 = vsel %vm251, %v638, 0
    %657 = vmatpush.bf16.msra.mxu0 0
    %658 = vmatpush.bf16.msra.mxu0 0
    %659 = vmatpush.bf16.msra.mxu0 0
    %660 = vmatpush.bf16.msra.mxu0 0
    %661 = vmatpush.bf16.msra.mxu0 0
    %662 = vmatpush.bf16.msra.mxu0 0
    %663 = vmatpush.bf16.msra.mxu0 %v651
    %664 = vmatpush.bf16.msra.mxu0 %v650
    %665 = vmatmul.bf16.gmra.mxu0 %v655
    %v666 = vpop.f32.mrf.mxu0
    %v667 = vadd.f32 %v640, %v666
    %v668 = vpop.f32.mrf.mxu0
    %v669 = vadd.f32 %v640, %v668
    %670 = vdwg.mxu0
    %v671 = vadd.f32 %v667, %v311
    %v672 = vadd.f32 %v669, %v312
    %v673 = vsel %vm251, %v671, 0.0
    %674 = vadd.xlane.f32.xlu0 %v673
    %v675 = vpop.xlane.xlu0 %674
    %v676 = vsel %vm251, %v672, 0.0
    %677 = vadd.xlane.f32.xlu0 %v676
    %v678 = vpop.xlane.xlu0 %677
    %v679 = vmul.f32 %v675, %v264
    %v680 = vmul.f32 %v678, %v264
    %v681 = vsub.f32 %v671, %v679
    %v682 = vsub.f32 %v672, %v680
    %v683 = vmul.f32 %v681, %v681
    %v684 = vmul.f32 %v682, %v682
    %v685 = vsel %vm251, %v683, 0.0
    %686 = vadd.xlane.f32.xlu0 %v685
    %v687 = vpop.xlane.xlu0 %686
    %v688 = vsel %vm251, %v684, 0.0
    %689 = vadd.xlane.f32.xlu0 %v688
    %v690 = vpop.xlane.xlu0 %689
    %v691 = vmul.f32 %v687, %v264
    %v692 = vmul.f32 %v690, %v264
    %v693 = vadd.f32 %v691, 1e-12
    %v694 = vadd.f32 %v692, 1e-12
    %v695 = vrsqrt.pop %v693
    %v696 = vmul.f32 %v695, %v693
    %v697 = vmul.f32 %v696, %v695
    %v698 = vmul.f32 0.5, %v697
    %v699 = vsub.f32 1.5, %v698
    %v700 = vmul.f32 %v695, %v699
    %vm701 = vweird.f32 %v693
    %vm702 = vweird.f32 %v695
    %vm703 = vmor %vm701, %vm702
    %v704 = vsel %vm703, %v695, %v700
    %v705 = vrsqrt.pop %v694
    %v706 = vmul.f32 %v705, %v694
    %v707 = vmul.f32 %v706, %v705
    %v708 = vmul.f32 0.5, %v707
    %v709 = vsub.f32 1.5, %v708
    %v710 = vmul.f32 %v705, %v709
    %vm711 = vweird.f32 %v694
    %vm712 = vweird.f32 %v705
    %vm713 = vmor %vm711, %vm712
    %v714 = vsel %vm713, %v705, %v710
    %v715 = vmul.f32 %v681, %v704
    %v716 = vmul.f32 %v682, %v714
    %v718 = vperm.slane %v335, 0
    %v720 = vmul.f32 %v715, %v718
    %v721 = vmul.f32 %v716, %v718
    %v723 = vperm.slane %v336, 0
    %v725 = vadd.f32 %v720, %v723
    %v726 = vadd.f32 %v721, %v723
    %v727 = vpack.c.bf16 %v726, %v725
    %v729 = vperm.slane %v341, 0
    %v735 = vunpack.c.l.b16 %v337
    %v736 = vunpack.c.l.b16 %v338
    %v737 = vunpack.c.l.b16 %v339
    %v738 = vunpack.c.l.b16 %v340
    %v739 = vpack.c.b16 %v736, %v735
    %v740 = vpack.c.b16 %v738, %v737
    %v744 = vsel %vm251, %v727, 0
    %746 = vmatpush.bf16.msra.mxu0 0
    %747 = vmatpush.bf16.msra.mxu0 0
    %748 = vmatpush.bf16.msra.mxu0 0
    %749 = vmatpush.bf16.msra.mxu0 0
    %750 = vmatpush.bf16.msra.mxu0 0
    %751 = vmatpush.bf16.msra.mxu0 0
    %752 = vmatpush.bf16.msra.mxu0 %v740
    %753 = vmatpush.bf16.msra.mxu0 %v739
    %754 = vmatmul.bf16.gmra.mxu0 %v744
    %v755 = vpop.f32.mrf.mxu0
    %v756 = vadd.f32 %v729, %v755
    %v757 = vpop.f32.mrf.mxu0
    %v758 = vadd.f32 %v729, %v757
    %759 = vdwg.mxu0
    %v760 = vmul.f32 %v756, 0.5
    %v761 = vmul.f32 %v758, 0.5
    %v762 = vmul.f32 %v756, 0.044715
    %v763 = vmul.f32 %v758, 0.044715
    %v764 = vmul.f32 %v762, %v756
    %v765 = vmul.f32 %v763, %v758
    %v766 = vmul.f32 %v764, %v756
    %v767 = vmul.f32 %v765, %v758
    %v768 = vadd.f32 %v756, %v766
    %v769 = vadd.f32 %v758, %v767
    %v770 = vmul.f32 %v768, 0.7978846
    %v771 = vmul.f32 %v769, 0.7978846
    %v772 = vtanh.pop %v770
    %v773 = vtanh.pop %v771
    %v774 = vadd.f32 %v772, 1.0
    %v775 = vadd.f32 %v773, 1.0
    %v776 = vmul.f32 %v760, %v774
    %v777 = vmul.f32 %v761, %v775
    %v778 = vpack.c.bf16 %v777, %v776
    %v780 = vperm.slane %v350, 0
    %v790 = vunpack.c.l.b16 %v342
    %v791 = vunpack.c.l.b16 %v343
    %v792 = vunpack.c.l.b16 %v344
    %v793 = vunpack.c.l.b16 %v345
    %v794 = vunpack.c.l.b16 %v346
    %v795 = vunpack.c.l.b16 %v347
    %v796 = vunpack.c.l.b16 %v348
    %v797 = vunpack.c.l.b16 %v349
    %v798 = vpack.c.b16 %v791, %v790
    %v799 = vpack.c.b16 %v793, %v792
    %v800 = vpack.c.b16 %v795, %v794
    %v801 = vpack.c.b16 %v797, %v796
    %vm806 = vcmask 523264
    %v808 = vsel %vm806, %v778, 0
    %810 = vmatpush.bf16.msra.mxu0 0
    %811 = vmatpush.bf16.msra.mxu0 0
    %812 = vmatpush.bf16.msra.mxu0 0
    %813 = vmatpush.bf16.msra.mxu0 0
    %814 = vmatpush.bf16.msra.mxu0 %v801
    %815 = vmatpush.bf16.msra.mxu0 %v800
    %816 = vmatpush.bf16.msra.mxu0 %v799
    %817 = vmatpush.bf16.msra.mxu0 %v798
    %818 = vmatmul.bf16.gmra.mxu0 %v808
    %v819 = vpop.f32.mrf.mxu0
    %v820 = vadd.f32 %v780, %v819
    %v821 = vpop.f32.mrf.mxu0
    %v822 = vadd.f32 %v780, %v821
    %823 = vdwg.mxu0
    %v824 = vadd.f32 %v820, %v725
    %v825 = vadd.f32 %v822, %v726
    %v826 = vsel %vm251, %v824, 0.0
    %827 = vadd.xlane.f32.xlu0 %v826
    %v828 = vpop.xlane.xlu0 %827
    %v829 = vsel %vm251, %v825, 0.0
    %830 = vadd.xlane.f32.xlu0 %v829
    %v831 = vpop.xlane.xlu0 %830
    %v832 = vmul.f32 %v828, %v264
    %v833 = vmul.f32 %v831, %v264
    %v834 = vsub.f32 %v824, %v832
    %v835 = vsub.f32 %v825, %v833
    %v836 = vmul.f32 %v834, %v834
    %v837 = vmul.f32 %v835, %v835
    %v838 = vsel %vm251, %v836, 0.0
    %839 = vadd.xlane.f32.xlu0 %v838
    %v840 = vpop.xlane.xlu0 %839
    %v841 = vsel %vm251, %v837, 0.0
    %842 = vadd.xlane.f32.xlu0 %v841
    %v843 = vpop.xlane.xlu0 %842
    %v844 = vmul.f32 %v840, %v264
    %v845 = vmul.f32 %v843, %v264
    %v846 = vadd.f32 %v844, 1e-12
    %v847 = vadd.f32 %v845, 1e-12
    %v848 = vrsqrt.pop %v846
    %v849 = vmul.f32 %v848, %v846
    %v850 = vmul.f32 %v849, %v848
    %v851 = vmul.f32 0.5, %v850
    %v852 = vsub.f32 1.5, %v851
    %v853 = vmul.f32 %v848, %v852
    %vm854 = vweird.f32 %v846
    %vm855 = vweird.f32 %v848
    %vm856 = vmor %vm854, %vm855
    %v857 = vsel %vm856, %v848, %v853
    %v858 = vrsqrt.pop %v847
    %v859 = vmul.f32 %v858, %v847
    %v860 = vmul.f32 %v859, %v858
    %v861 = vmul.f32 0.5, %v860
    %v862 = vsub.f32 1.5, %v861
    %v863 = vmul.f32 %v858, %v862
    %vm864 = vweird.f32 %v847
    %vm865 = vweird.f32 %v858
    %vm866 = vmor %vm864, %vm865
    %v867 = vsel %vm866, %v858, %v863
    %v868 = vmul.f32 %v834, %v857
    %v869 = vmul.f32 %v835, %v867
    %v871 = vperm.slane %v351, 0
    %v873 = vmul.f32 %v868, %v871
    %v874 = vmul.f32 %v869, %v871
    %v876 = vperm.slane %v352, 0
    %v878 = vadd.f32 %v873, %v876
    %v879 = vadd.f32 %v874, %v876
    %s880 = scalar_lea.vmem %s21, 16
    %v881 = vld [vmem:[%s880] sm:$0xf]
    %v882 = vld [vmem:[%s880 + $0x4] sm:$0xf]
    %v883 = vld [vmem:[%s880 + $0x8] sm:$0xf]
    %v884 = vld [vmem:[%s880 + $0xc] sm:$0xf]
    %s885 = scalar_lea.vmem %s23, 1
    %v886 = vld [vmem:[%s885] sm:$0x1]
    %s887 = scalar_lea.vmem %s25, 16
    %v888 = vld [vmem:[%s887] sm:$0xf]
    %v889 = vld [vmem:[%s887 + $0x4] sm:$0xf]
    %v890 = vld [vmem:[%s887 + $0x8] sm:$0xf]
    %v891 = vld [vmem:[%s887 + $0xc] sm:$0xf]
    %s892 = scalar_lea.vmem %s27, 1
    %v893 = vld [vmem:[%s892] sm:$0x1]
    %s894 = scalar_lea.vmem %s29, 1
    %v895 = vld [vmem:[%s894] sm:$0x1]
    %s896 = scalar_lea.vmem %s31, 1
    %v897 = vld [vmem:[%s896] sm:$0x1]
    %s898 = scalar_lea.vmem %s33, 16
    %v899 = vld [vmem:[%s898] sm:$0xf]
    %v900 = vld [vmem:[%s898 + $0x4] sm:$0xf]
    %v901 = vld [vmem:[%s898 + $0x8] sm:$0xf]
    %v902 = vld [vmem:[%s898 + $0xc] sm:$0xf]
    %s903 = scalar_lea.vmem %s35, 1
    %v904 = vld [vmem:[%s903] sm:$0x1]
    %s905 = scalar_lea.vmem %s37, 32
    %v906 = vld [vmem:[%s905] sm:$0xf]
    %v907 = vld [vmem:[%s905 + $0x4] sm:$0xf]
    %v908 = vld [vmem:[%s905 + $0x8] sm:$0xf]
    %v909 = vld [vmem:[%s905 + $0xc] sm:$0xf]
    %v910 = vld [vmem:[%s905 + $0x10] sm:$0xf]
    %v911 = vld [vmem:[%s905 + $0x14] sm:$0xf]
    %v912 = vld [vmem:[%s905 + $0x18] sm:$0xf]
    %v913 = vld [vmem:[%s905 + $0x1c] sm:$0xf]
    %s914 = scalar_lea.vmem %s39, 1
    %v915 = vld [vmem:[%s914] sm:$0x1]
    %s916 = scalar_lea.vmem %s41, 1
    %v917 = vld [vmem:[%s916] sm:$0x1]
    %s918 = scalar_lea.vmem %s43, 1
    %v919 = vld [vmem:[%s918] sm:$0x1]
    %v920 = vpack.c.bf16 %v879, %v878
    %v922 = vperm.slane %v886, 0
    %v928 = vunpack.c.l.b16 %v881
    %v929 = vunpack.c.l.b16 %v882
    %v930 = vunpack.c.l.b16 %v883
    %v931 = vunpack.c.l.b16 %v884
    %v932 = vpack.c.b16 %v929, %v928
    %v933 = vpack.c.b16 %v931, %v930
    %v937 = vsel %vm251, %v920, 0
    %939 = vmatpush.bf16.msra.mxu0 0
    %940 = vmatpush.bf16.msra.mxu0 0
    %941 = vmatpush.bf16.msra.mxu0 0
    %942 = vmatpush.bf16.msra.mxu0 0
    %943 = vmatpush.bf16.msra.mxu0 0
    %944 = vmatpush.bf16.msra.mxu0 0
    %945 = vmatpush.bf16.msra.mxu0 %v933
    %946 = vmatpush.bf16.msra.mxu0 %v932
    %947 = vmatmul.bf16.gmra.mxu0 %v937
    %v948 = vpop.f32.mrf.mxu0
    %v949 = vadd.f32 %v922, %v948
    %v950 = vpop.f32.mrf.mxu0
    %v951 = vadd.f32 %v922, %v950
    %952 = vdwg.mxu0
    %955 = vrot.lane.b32.xlu0 %v949, 112
    %v956 = vpop.permute.xlu0 %955
    %957 = vrot.lane.b32.xlu0 %v951, 112
    %v958 = vpop.permute.xlu0 %957
    %v961 = vpack.c.bf16 %v949, %v949
    %v962 = vpack.c.bf16 %v951, %v951
    %v963 = vpack.c.bf16 %v956, %v956
    %v964 = vpack.c.bf16 %v958, %v958
    %v966 = vunpack.c.l.b16 %v961
    %v967 = vpack.c.b16 %v966, %v966
    %968 = vrot.lane.b32.xlu0 %v967, 96
    %v969 = vpop.permute.xlu0 %968
    %v971 = vsel %vm174, %v961, 0
    %v974 = vsel %vm174, %v969, 0
    %976 = vmatpush.bf16.xpose.msra.mxu0 0
    %977 = vmatpush.bf16.xpose.msra.mxu0 0
    %978 = vmatpush.bf16.xpose.msra.mxu0 0
    %979 = vmatpush.bf16.xpose.msra.mxu0 0
    %980 = vmatpush.bf16.xpose.msra.mxu0 0
    %981 = vmatpush.bf16.xpose.msra.mxu0 0
    %982 = vmatpush.bf16.xpose.msra.mxu0 0
    %983 = vmatpush.bf16.xpose.msra.mxu0 %v974
    %984 = vmatmul.bf16.gmra.mxu0 %v971
    %v985 = vpop.f32.mrf.mxu0
    %v986 = vadd.f32 %v321, %v985
    %v987 = vpop.f32.mrf.mxu0
    %988 = vdwg.mxu0
    %v990 = vunpack.c.l.b16 %v962
    %v991 = vpack.c.b16 %v990, %v990
    %992 = vrot.lane.b32.xlu0 %v991, 96
    %v993 = vpop.permute.xlu0 %992
    %v995 = vsel %vm174, %v962, 0
    %v998 = vsel %vm174, %v993, 0
    %1000 = vmatpush.bf16.xpose.msra.mxu0 0
    %1001 = vmatpush.bf16.xpose.msra.mxu0 0
    %1002 = vmatpush.bf16.xpose.msra.mxu0 0
    %1003 = vmatpush.bf16.xpose.msra.mxu0 0
    %1004 = vmatpush.bf16.xpose.msra.mxu0 0
    %1005 = vmatpush.bf16.xpose.msra.mxu0 0
    %1006 = vmatpush.bf16.xpose.msra.mxu0 0
    %1007 = vmatpush.bf16.xpose.msra.mxu0 %v998
    %1008 = vmatmul.bf16.gmra.mxu0 %v995
    %v1009 = vpop.f32.mrf.mxu0
    %v1010 = vadd.f32 %v322, %v1009
    %v1011 = vpop.f32.mrf.mxu0
    %1012 = vdwg.mxu0
    %v1014 = vunpack.c.l.b16 %v963
    %v1015 = vpack.c.b16 %v1014, %v1014
    %1016 = vrot.lane.b32.xlu0 %v1015, 96
    %v1017 = vpop.permute.xlu0 %1016
    %v1019 = vsel %vm174, %v963, 0
    %v1022 = vsel %vm174, %v1017, 0
    %1024 = vmatpush.bf16.xpose.msra.mxu0 0
    %1025 = vmatpush.bf16.xpose.msra.mxu0 0
    %1026 = vmatpush.bf16.xpose.msra.mxu0 0
    %1027 = vmatpush.bf16.xpose.msra.mxu0 0
    %1028 = vmatpush.bf16.xpose.msra.mxu0 0
    %1029 = vmatpush.bf16.xpose.msra.mxu0 0
    %1030 = vmatpush.bf16.xpose.msra.mxu0 0
    %1031 = vmatpush.bf16.xpose.msra.mxu0 %v1022
    %1032 = vmatmul.bf16.gmra.mxu0 %v1019
    %v1033 = vpop.f32.mrf.mxu0
    %v1034 = vadd.f32 %v321, %v1033
    %v1035 = vpop.f32.mrf.mxu0
    %1036 = vdwg.mxu0
    %v1038 = vunpack.c.l.b16 %v964
    %v1039 = vpack.c.b16 %v1038, %v1038
    %1040 = vrot.lane.b32.xlu0 %v1039, 96
    %v1041 = vpop.permute.xlu0 %1040
    %v1043 = vsel %vm174, %v964, 0
    %v1046 = vsel %vm174, %v1041, 0
    %1048 = vmatpush.bf16.xpose.msra.mxu0 0
    %1049 = vmatpush.bf16.xpose.msra.mxu0 0
    %1050 = vmatpush.bf16.xpose.msra.mxu0 0
    %1051 = vmatpush.bf16.xpose.msra.mxu0 0
    %1052 = vmatpush.bf16.xpose.msra.mxu0 0
    %1053 = vmatpush.bf16.xpose.msra.mxu0 0
    %1054 = vmatpush.bf16.xpose.msra.mxu0 0
    %1055 = vmatpush.bf16.xpose.msra.mxu0 %v1046
    %1056 = vmatmul.bf16.gmra.mxu0 %v1043
    %v1057 = vpop.f32.mrf.mxu0
    %v1058 = vadd.f32 %v322, %v1057
    %v1059 = vpop.f32.mrf.mxu0
    %1060 = vdwg.mxu0
    %v1061 = vsel %vm494, %v986, -inf
    %1062 = vmax.xlane.f32.xlu0 %v1061
    %v1063 = vpop.xlane.xlu0 %1062
    %v1064 = vsel %vm494, %v1010, -inf
    %1065 = vmax.xlane.f32.xlu0 %v1064
    %v1066 = vpop.xlane.xlu0 %1065
    %v1067 = vsel %vm494, %v1034, -inf
    %1068 = vmax.xlane.f32.xlu0 %v1067
    %v1069 = vpop.xlane.xlu0 %1068
    %v1070 = vsel %vm494, %v1058, -inf
    %1071 = vmax.xlane.f32.xlu0 %v1070
    %v1072 = vpop.xlane.xlu0 %1071
    %v1073 = vsub.f32 %v986, %v1063
    %v1074 = vsub.f32 %v1010, %v1066
    %v1075 = vsub.f32 %v1034, %v1069
    %v1076 = vsub.f32 %v1058, %v1072
    %v1077 = vmul.f32 %v1073, 1.442695
    %v1078 = vpow.pop %v1077
    %v1079 = vmul.f32 %v1074, 1.442695
    %v1080 = vpow.pop %v1079
    %v1081 = vmul.f32 %v1075, 1.442695
    %v1082 = vpow.pop %v1081
    %v1083 = vmul.f32 %v1076, 1.442695
    %v1084 = vpow.pop %v1083
    %v1085 = vsel %vm494, %v1078, 0.0
    %1086 = vadd.xlane.f32.xlu0 %v1085
    %v1087 = vpop.xlane.xlu0 %1086
    %v1088 = vsel %vm494, %v1080, 0.0
    %1089 = vadd.xlane.f32.xlu0 %v1088
    %v1090 = vpop.xlane.xlu0 %1089
    %v1091 = vsel %vm494, %v1082, 0.0
    %1092 = vadd.xlane.f32.xlu0 %v1091
    %v1093 = vpop.xlane.xlu0 %1092
    %v1094 = vsel %vm494, %v1084, 0.0
    %1095 = vadd.xlane.f32.xlu0 %v1094
    %v1096 = vpop.xlane.xlu0 %1095
    %v1097 = vrcp.pop %v1087
    %v1098 = vrcp.pop %v1090
    %v1099 = vrcp.pop %v1093
    %v1100 = vrcp.pop %v1096
    %v1101 = vmul.f32 %v1078, %v1097
    %v1102 = vmul.f32 %v1080, %v1098
    %v1103 = vmul.f32 %v1082, %v1099
    %v1104 = vmul.f32 %v1084, %v1100
    %v1105 = vpack.c.bf16 %v1101, %v1101
    %v1106 = vpack.c.bf16 %v1102, %v1102
    %v1107 = vpack.c.bf16 %v1103, %v1103
    %v1108 = vpack.c.bf16 %v1104, %v1104
    %1109 = vrot.lane.b32.xlu0 %v967, 64
    %v1110 = vpop.permute.xlu0 %1109
    %v1112 = vsel %vm494, %v1105, 0
    %v1115 = vsel %vm548, %v1110, 0
    %1117 = vmatpush.bf16.msra.mxu0 0
    %1118 = vmatpush.bf16.msra.mxu0 0
    %1119 = vmatpush.bf16.msra.mxu0 0
    %1120 = vmatpush.bf16.msra.mxu0 0
    %1121 = vmatpush.bf16.msra.mxu0 0
    %1122 = vmatpush.bf16.msra.mxu0 0
    %1123 = vmatpush.bf16.msra.mxu0 0
    %1124 = vmatpush.bf16.msra.mxu0 %v1115
    %1125 = vmatmul.bf16.gmra.mxu0 %v1112
    %v1126 = vpop.f32.mrf.mxu0
    %v1127 = vadd.f32 0.0, %v1126
    %v1128 = vpop.f32.mrf.mxu0
    %1129 = vdwg.mxu0
    %1130 = vrot.lane.b32.xlu0 %v991, 64
    %v1131 = vpop.permute.xlu0 %1130
    %v1133 = vsel %vm494, %v1106, 0
    %v1136 = vsel %vm548, %v1131, 0
    %1138 = vmatpush.bf16.msra.mxu0 0
    %1139 = vmatpush.bf16.msra.mxu0 0
    %1140 = vmatpush.bf16.msra.mxu0 0
    %1141 = vmatpush.bf16.msra.mxu0 0
    %1142 = vmatpush.bf16.msra.mxu0 0
    %1143 = vmatpush.bf16.msra.mxu0 0
    %1144 = vmatpush.bf16.msra.mxu0 0
    %1145 = vmatpush.bf16.msra.mxu0 %v1136
    %1146 = vmatmul.bf16.gmra.mxu0 %v1133
    %v1147 = vpop.f32.mrf.mxu0
    %v1148 = vadd.f32 0.0, %v1147
    %v1149 = vpop.f32.mrf.mxu0
    %1150 = vdwg.mxu0
    %1151 = vrot.lane.b32.xlu0 %v1015, 64
    %v1152 = vpop.permute.xlu0 %1151
    %v1154 = vsel %vm494, %v1107, 0
    %v1157 = vsel %vm548, %v1152, 0
    %1159 = vmatpush.bf16.msra.mxu0 0
    %1160 = vmatpush.bf16.msra.mxu0 0
    %1161 = vmatpush.bf16.msra.mxu0 0
    %1162 = vmatpush.bf16.msra.mxu0 0
    %1163 = vmatpush.bf16.msra.mxu0 0
    %1164 = vmatpush.bf16.msra.mxu0 0
    %1165 = vmatpush.bf16.msra.mxu0 0
    %1166 = vmatpush.bf16.msra.mxu0 %v1157
    %1167 = vmatmul.bf16.gmra.mxu0 %v1154
    %v1168 = vpop.f32.mrf.mxu0
    %v1169 = vadd.f32 0.0, %v1168
    %v1170 = vpop.f32.mrf.mxu0
    %1171 = vdwg.mxu0
    %1172 = vrot.lane.b32.xlu0 %v1039, 64
    %v1173 = vpop.permute.xlu0 %1172
    %v1175 = vsel %vm494, %v1108, 0
    %v1178 = vsel %vm548, %v1173, 0
    %1180 = vmatpush.bf16.msra.mxu0 0
    %1181 = vmatpush.bf16.msra.mxu0 0
    %1182 = vmatpush.bf16.msra.mxu0 0
    %1183 = vmatpush.bf16.msra.mxu0 0
    %1184 = vmatpush.bf16.msra.mxu0 0
    %1185 = vmatpush.bf16.msra.mxu0 0
    %1186 = vmatpush.bf16.msra.mxu0 0
    %1187 = vmatpush.bf16.msra.mxu0 %v1178
    %1188 = vmatmul.bf16.gmra.mxu0 %v1175
    %v1189 = vpop.f32.mrf.mxu0
    %v1190 = vadd.f32 0.0, %v1189
    %v1191 = vpop.f32.mrf.mxu0
    %1192 = vdwg.mxu0
    %1195 = vrot.lane.b32.xlu0 %v1169, 16
    %v1196 = vpop.permute.xlu0 %1195
    %1197 = vrot.lane.b32.xlu0 %v1190, 16
    %v1198 = vpop.permute.xlu0 %1197
    %v1201 = vsel %vm174, %v1127, %v1196
    %v1202 = vsel %vm174, %v1148, %v1198
    %v1203 = vpack.c.bf16 %v1202, %v1201
    %v1205 = vperm.slane %v893, 0
    %v1211 = vunpack.c.l.b16 %v888
    %v1212 = vunpack.c.l.b16 %v889
    %v1213 = vunpack.c.l.b16 %v890
    %v1214 = vunpack.c.l.b16 %v891
    %v1215 = vpack.c.b16 %v1212, %v1211
    %v1216 = vpack.c.b16 %v1214, %v1213
    %v1220 = vsel %vm251, %v1203, 0
    %1222 = vmatpush.bf16.msra.mxu0 0
    %1223 = vmatpush.bf16.msra.mxu0 0
    %1224 = vmatpush.bf16.msra.mxu0 0
    %1225 = vmatpush.bf16.msra.mxu0 0
    %1226 = vmatpush.bf16.msra.mxu0 0
    %1227 = vmatpush.bf16.msra.mxu0 0
    %1228 = vmatpush.bf16.msra.mxu0 %v1216
    %1229 = vmatpush.bf16.msra.mxu0 %v1215
    %1230 = vmatmul.bf16.gmra.mxu0 %v1220
    %v1231 = vpop.f32.mrf.mxu0
    %v1232 = vadd.f32 %v1205, %v1231
    %v1233 = vpop.f32.mrf.mxu0
    %v1234 = vadd.f32 %v1205, %v1233
    %1235 = vdwg.mxu0
    %v1236 = vadd.f32 %v1232, %v878
    %v1237 = vadd.f32 %v1234, %v879
    %v1238 = vsel %vm251, %v1236, 0.0
    %1239 = vadd.xlane.f32.xlu0 %v1238
    %v1240 = vpop.xlane.xlu0 %1239
    %v1241 = vsel %vm251, %v1237, 0.0
    %1242 = vadd.xlane.f32.xlu0 %v1241
    %v1243 = vpop.xlane.xlu0 %1242
    %v1244 = vmul.f32 %v1240, %v264
    %v1245 = vmul.f32 %v1243, %v264
    %v1246 = vsub.f32 %v1236, %v1244
    %v1247 = vsub.f32 %v1237, %v1245
    %v1248 = vmul.f32 %v1246, %v1246
    %v1249 = vmul.f32 %v1247, %v1247
    %v1250 = vsel %vm251, %v1248, 0.0
    %1251 = vadd.xlane.f32.xlu0 %v1250
    %v1252 = vpop.xlane.xlu0 %1251
    %v1253 = vsel %vm251, %v1249, 0.0
    %1254 = vadd.xlane.f32.xlu0 %v1253
    %v1255 = vpop.xlane.xlu0 %1254
    %v1256 = vmul.f32 %v1252, %v264
    %v1257 = vmul.f32 %v1255, %v264
    %v1258 = vadd.f32 %v1256, 1e-12
    %v1259 = vadd.f32 %v1257, 1e-12
    %v1260 = vrsqrt.pop %v1258
    %v1261 = vmul.f32 %v1260, %v1258
    %v1262 = vmul.f32 %v1261, %v1260
    %v1263 = vmul.f32 0.5, %v1262
    %v1264 = vsub.f32 1.5, %v1263
    %v1265 = vmul.f32 %v1260, %v1264
    %vm1266 = vweird.f32 %v1258
    %vm1267 = vweird.f32 %v1260
    %vm1268 = vmor %vm1266, %vm1267
    %v1269 = vsel %vm1268, %v1260, %v1265
    %v1270 = vrsqrt.pop %v1259
    %v1271 = vmul.f32 %v1270, %v1259
    %v1272 = vmul.f32 %v1271, %v1270
    %v1273 = vmul.f32 0.5, %v1272
    %v1274 = vsub.f32 1.5, %v1273
    %v1275 = vmul.f32 %v1270, %v1274
    %vm1276 = vweird.f32 %v1259
    %vm1277 = vweird.f32 %v1270
    %vm1278 = vmor %vm1276, %vm1277
    %v1279 = vsel %vm1278, %v1270, %v1275
    %v1280 = vmul.f32 %v1246, %v1269
    %v1281 = vmul.f32 %v1247, %v1279
    %v1283 = vperm.slane %v895, 0
    %v1285 = vmul.f32 %v1280, %v1283
    %v1286 = vmul.f32 %v1281, %v1283
    %v1288 = vperm.slane %v897, 0
    %v1290 = vadd.f32 %v1285, %v1288
    %v1291 = vadd.f32 %v1286, %v1288
    %v1292 = vpack.c.bf16 %v1291, %v1290
    %v1294 = vperm.slane %v904, 0
    %v1300 = vunpack.c.l.b16 %v899
    %v1301 = vunpack.c.l.b16 %v900
    %v1302 = vunpack.c.l.b16 %v901
    %v1303 = vunpack.c.l.b16 %v902
    %v1304 = vpack.c.b16 %v1301, %v1300
    %v1305 = vpack.c.b16 %v1303, %v1302
    %v1309 = vsel %vm251, %v1292, 0
    %1311 = vmatpush.bf16.msra.mxu0 0
    %1312 = vmatpush.bf16.msra.mxu0 0
    %1313 = vmatpush.bf16.msra.mxu0 0
    %1314 = vmatpush.bf16.msra.mxu0 0
    %1315 = vmatpush.bf16.msra.mxu0 0
    %1316 = vmatpush.bf16.msra.mxu0 0
    %1317 = vmatpush.bf16.msra.mxu0 %v1305
    %1318 = vmatpush.bf16.msra.mxu0 %v1304
    %1319 = vmatmul.bf16.gmra.mxu0 %v1309
    %v1320 = vpop.f32.mrf.mxu0
    %v1321 = vadd.f32 %v1294, %v1320
    %v1322 = vpop.f32.mrf.mxu0
    %v1323 = vadd.f32 %v1294, %v1322
    %1324 = vdwg.mxu0
    %v1325 = vmul.f32 %v1321, 0.5
    %v1326 = vmul.f32 %v1323, 0.5
    %v1327 = vmul.f32 %v1321, 0.044715
    %v1328 = vmul.f32 %v1323, 0.044715
    %v1329 = vmul.f32 %v1327, %v1321
    %v1330 = vmul.f32 %v1328, %v1323
    %v1331 = vmul.f32 %v1329, %v1321
    %v1332 = vmul.f32 %v1330, %v1323
    %v1333 = vadd.f32 %v1321, %v1331
    %v1334 = vadd.f32 %v1323, %v1332
    %v1335 = vmul.f32 %v1333, 0.7978846
    %v1336 = vmul.f32 %v1334, 0.7978846
    %v1337 = vtanh.pop %v1335
    %v1338 = vtanh.pop %v1336
    %v1339 = vadd.f32 %v1337, 1.0
    %v1340 = vadd.f32 %v1338, 1.0
    %v1341 = vmul.f32 %v1325, %v1339
    %v1342 = vmul.f32 %v1326, %v1340
    %v1343 = vpack.c.bf16 %v1342, %v1341
    %v1345 = vperm.slane %v915, 0
    %v1355 = vunpack.c.l.b16 %v906
    %v1356 = vunpack.c.l.b16 %v907
    %v1357 = vunpack.c.l.b16 %v908
    %v1358 = vunpack.c.l.b16 %v909
    %v1359 = vunpack.c.l.b16 %v910
    %v1360 = vunpack.c.l.b16 %v911
    %v1361 = vunpack.c.l.b16 %v912
    %v1362 = vunpack.c.l.b16 %v913
    %v1363 = vpack.c.b16 %v1356, %v1355
    %v1364 = vpack.c.b16 %v1358, %v1357
    %v1365 = vpack.c.b16 %v1360, %v1359
    %v1366 = vpack.c.b16 %v1362, %v1361
    %v1372 = vsel %vm806, %v1343, 0
    %1374 = vmatpush.bf16.msra.mxu0 0
    %1375 = vmatpush.bf16.msra.mxu0 0
    %1376 = vmatpush.bf16.msra.mxu0 0
    %1377 = vmatpush.bf16.msra.mxu0 0
    %1378 = vmatpush.bf16.msra.mxu0 %v1366
    %1379 = vmatpush.bf16.msra.mxu0 %v1365
    %1380 = vmatpush.bf16.msra.mxu0 %v1364
    %1381 = vmatpush.bf16.msra.mxu0 %v1363
    %1382 = vmatmul.bf16.gmra.mxu0 %v1372
    %v1383 = vpop.f32.mrf.mxu0
    %v1384 = vadd.f32 %v1345, %v1383
    %v1385 = vpop.f32.mrf.mxu0
    %v1386 = vadd.f32 %v1345, %v1385
    %1387 = vdwg.mxu0
    %v1388 = vadd.f32 %v1384, %v1290
    %v1389 = vadd.f32 %v1386, %v1291
    %v1390 = vsel %vm251, %v1388, 0.0
    %1391 = vadd.xlane.f32.xlu0 %v1390
    %v1392 = vpop.xlane.xlu0 %1391
    %v1393 = vsel %vm251, %v1389, 0.0
    %1394 = vadd.xlane.f32.xlu0 %v1393
    %v1395 = vpop.xlane.xlu0 %1394
    %v1396 = vmul.f32 %v1392, %v264
    %v1397 = vmul.f32 %v1395, %v264
    %v1398 = vsub.f32 %v1388, %v1396
    %v1399 = vsub.f32 %v1389, %v1397
    %v1400 = vmul.f32 %v1398, %v1398
    %v1401 = vmul.f32 %v1399, %v1399
    %v1402 = vsel %vm251, %v1400, 0.0
    %1403 = vadd.xlane.f32.xlu0 %v1402
    %v1404 = vpop.xlane.xlu0 %1403
    %v1405 = vsel %vm251, %v1401, 0.0
    %1406 = vadd.xlane.f32.xlu0 %v1405
    %v1407 = vpop.xlane.xlu0 %1406
    %v1408 = vmul.f32 %v1404, %v264
    %v1409 = vmul.f32 %v1407, %v264
    %v1410 = vadd.f32 %v1408, 1e-12
    %v1411 = vadd.f32 %v1409, 1e-12
    %v1412 = vrsqrt.pop %v1410
    %v1413 = vmul.f32 %v1412, %v1410
    %v1414 = vmul.f32 %v1413, %v1412
    %v1415 = vmul.f32 0.5, %v1414
    %v1416 = vsub.f32 1.5, %v1415
    %v1417 = vmul.f32 %v1412, %v1416
    %vm1418 = vweird.f32 %v1410
    %vm1419 = vweird.f32 %v1412
    %vm1420 = vmor %vm1418, %vm1419
    %v1421 = vsel %vm1420, %v1412, %v1417
    %v1422 = vrsqrt.pop %v1411
    %v1423 = vmul.f32 %v1422, %v1411
    %v1424 = vmul.f32 %v1423, %v1422
    %v1425 = vmul.f32 0.5, %v1424
    %v1426 = vsub.f32 1.5, %v1425
    %v1427 = vmul.f32 %v1422, %v1426
    %vm1428 = vweird.f32 %v1411
    %vm1429 = vweird.f32 %v1422
    %vm1430 = vmor %vm1428, %vm1429
    %v1431 = vsel %vm1430, %v1422, %v1427
    %v1432 = vmul.f32 %v1398, %v1421
    %v1433 = vmul.f32 %v1399, %v1431
    %v1435 = vperm.slane %v917, 0
    %v1437 = vmul.f32 %v1432, %v1435
    %v1438 = vmul.f32 %v1433, %v1435
    %v1440 = vperm.slane %v919, 0
    %v1442 = vadd.f32 %v1437, %v1440
    %v1443 = vadd.f32 %v1438, %v1440
    %1444 = vst.msk [vmem:[%s57] sm:$0xff] %vm251, %v1442
    %1445 = vst.msk [vmem:[%s57 + $0x8] sm:$0xff] %vm251, %v1443
    %v1446 = vld [vmem:[%s45] sm:$0xff]
    %v1447 = vld [vmem:[%s45 + $0x8] sm:$0xff]
    %v1448 = vld [vmem:[%s45 + $0x10] sm:$0xff]
    %v1449 = vld [vmem:[%s45 + $0x18] sm:$0xff]
    %v1450 = vld [vmem:[%s47] sm:$0x1]
    %v1452 = vperm.slane %v1450, 0
    %v1455 = vsel %vm251, %v1442, 0
    %v1458 = vsel %vm251, %v1443, 0
    %1460 = vmatpush.msra.mxu0 0.0
    %1461 = vmatpush.msra.mxu0 0.0
    %1462 = vmatpush.msra.mxu0 0.0
    %1463 = vmatpush.msra.mxu0 0.0
    %1464 = vmatpush.msra.mxu0 0.0
    %1465 = vmatpush.msra.mxu0 0.0
    %1466 = vmatpush.msra.mxu0 0.0
    %1467 = vmatpush.msra.mxu0 0.0
    %1468 = vmatpush.msra.mxu0 0.0
    %1469 = vmatpush.msra.mxu0 0.0
    %1470 = vmatpush.msra.mxu0 0.0
    %1471 = vmatpush.msra.mxu0 0.0
    %1472 = vmatpush.msra.mxu0 %v1449
    %1473 = vmatpush.msra.mxu0 %v1448
    %1474 = vmatpush.msra.mxu0 %v1447
    %1475 = vmatpush.msra.mxu0 %v1446
    %1476 = vmatmul.f32.gmra.mxu0 %v1455
    %v1477 = vpop.f32.mrf.mxu0
    %v1478 = vadd.f32 %v1452, %v1477
    %1479 = vmatmul.f32.gmra.mxu0 %v1458
    %v1480 = vpop.f32.mrf.mxu0
    %v1481 = vadd.f32 %v1452, %v1480
    %1482 = vdwg.mxu0
    %v1483 = vmul.f32 %v1478, 0.5
    %v1484 = vmul.f32 %v1481, 0.5
    %v1485 = vmul.f32 %v1478, 0.044715
    %v1486 = vmul.f32 %v1481, 0.044715
    %v1487 = vmul.f32 %v1485, %v1478
    %v1488 = vmul.f32 %v1486, %v1481
    %v1489 = vmul.f32 %v1487, %v1478
    %v1490 = vmul.f32 %v1488, %v1481
    %v1491 = vadd.f32 %v1478, %v1489
    %v1492 = vadd.f32 %v1481, %v1490
    %v1493 = vmul.f32 %v1491, 0.7978846
    %v1494 = vmul.f32 %v1492, 0.7978846
    %v1495 = vtanh.pop %v1493
    %v1496 = vtanh.pop %v1494
    %v1497 = vadd.f32 %v1495, 1.0
    %v1498 = vadd.f32 %v1496, 1.0
    %v1499 = vmul.f32 %v1483, %v1497
    %v1500 = vmul.f32 %v1484, %v1498
    %v1501 = vld [vmem:[%s49] sm:$0x1]
    %v1502 = vld [vmem:[%s51] sm:$0x1]
    %v1503 = vsel %vm251, %v1499, 0.0
    %1504 = vadd.xlane.f32.xlu0 %v1503
    %v1505 = vpop.xlane.xlu0 %1504
    %v1506 = vsel %vm251, %v1500, 0.0
    %1507 = vadd.xlane.f32.xlu0 %v1506
    %v1508 = vpop.xlane.xlu0 %1507
    %v1509 = vmul.f32 %v1505, %v264
    %v1510 = vmul.f32 %v1508, %v264
    %v1511 = vsub.f32 %v1499, %v1509
    %v1512 = vsub.f32 %v1500, %v1510
    %v1513 = vmul.f32 %v1511, %v1511
    %v1514 = vmul.f32 %v1512, %v1512
    %v1515 = vsel %vm251, %v1513, 0.0
    %1516 = vadd.xlane.f32.xlu0 %v1515
    %v1517 = vpop.xlane.xlu0 %1516
    %v1518 = vsel %vm251, %v1514, 0.0
    %1519 = vadd.xlane.f32.xlu0 %v1518
    %v1520 = vpop.xlane.xlu0 %1519
    %v1521 = vmul.f32 %v1517, %v264
    %v1522 = vmul.f32 %v1520, %v264
    %v1523 = vadd.f32 %v1521, 1e-12
    %v1524 = vadd.f32 %v1522, 1e-12
    %v1525 = vrsqrt.pop %v1523
    %v1526 = vmul.f32 %v1525, %v1523
    %v1527 = vmul.f32 %v1526, %v1525
    %v1528 = vmul.f32 0.5, %v1527
    %v1529 = vsub.f32 1.5, %v1528
    %v1530 = vmul.f32 %v1525, %v1529
    %vm1531 = vweird.f32 %v1523
    %vm1532 = vweird.f32 %v1525
    %vm1533 = vmor %vm1531, %vm1532
    %v1534 = vsel %vm1533, %v1525, %v1530
    %v1535 = vrsqrt.pop %v1524
    %v1536 = vmul.f32 %v1535, %v1524
    %v1537 = vmul.f32 %v1536, %v1535
    %v1538 = vmul.f32 0.5, %v1537
    %v1539 = vsub.f32 1.5, %v1538
    %v1540 = vmul.f32 %v1535, %v1539
    %vm1541 = vweird.f32 %v1524
    %vm1542 = vweird.f32 %v1535
    %vm1543 = vmor %vm1541, %vm1542
    %v1544 = vsel %vm1543, %v1535, %v1540
    %v1545 = vmul.f32 %v1511, %v1534
    %v1546 = vmul.f32 %v1512, %v1544
    %v1548 = vperm.slane %v1501, 0
    %v1550 = vmul.f32 %v1545, %v1548
    %v1551 = vmul.f32 %v1546, %v1548
    %v1553 = vperm.slane %v1502, 0
    %v1555 = vadd.f32 %v1550, %v1553
    %v1556 = vadd.f32 %v1551, %v1553
    %v1557 = vld [vmem:[%s53] sm:$0xff]
    %v1558 = vld [vmem:[%s53 + $0x8] sm:$0xff]
    %v1559 = vld [vmem:[%s53 + $0x10] sm:$0xff]
    %v1560 = vld [vmem:[%s53 + $0x18] sm:$0xff]
    %v1561 = vld [vmem:[%s55] sm:$0x1]
    %v1563 = vperm.slane %v1561, 0
    %v1566 = vsel %vm251, %v1555, 0
    %v1569 = vsel %vm251, %v1556, 0
    %1571 = vmatpush.msra.mxu0 0.0
    %1572 = vmatpush.msra.mxu0 0.0
    %1573 = vmatpush.msra.mxu0 0.0
    %1574 = vmatpush.msra.mxu0 0.0
    %1575 = vmatpush.msra.mxu0 0.0
    %1576 = vmatpush.msra.mxu0 0.0
    %1577 = vmatpush.msra.mxu0 0.0
    %1578 = vmatpush.msra.mxu0 0.0
    %1579 = vmatpush.msra.mxu0 0.0
    %1580 = vmatpush.msra.mxu0 0.0
    %1581 = vmatpush.msra.mxu0 0.0
    %1582 = vmatpush.msra.mxu0 0.0
    %1583 = vmatpush.msra.mxu0 %v1560
    %1584 = vmatpush.msra.mxu0 %v1559
    %1585 = vmatpush.msra.mxu0 %v1558
    %1586 = vmatpush.msra.mxu0 %v1557
    %1587 = vmatmul.f32.gmra.mxu0 %v1566
    %v1588 = vpop.f32.mrf.mxu0
    %v1589 = vadd.f32 %v1563, %v1588
    %1590 = vmatmul.f32.gmra.mxu0 %v1569
    %v1591 = vpop.f32.mrf.mxu0
    %v1592 = vadd.f32 %v1563, %v1591
    %1593 = vdwg.mxu0
    %1594 = vst [vmem:[#allocation2] sm:$0xff] %v1589
    %1595 = vst [vmem:[#allocation2 + $0x8] sm:$0xff] %v1592
    %v1596 = vld [vmem:[%s9] sm:$0xff]
    %v1597 = vld [vmem:[%s9 + $0x8] sm:$0xff]
    %1598 = vmax.xlane.f32.xlu0 %v1589
    %v1599 = vpop.xlane.xlu0 %1598
    %1600 = vmax.xlane.f32.xlu0 %v1592
    %v1601 = vpop.xlane.xlu0 %1600
    %v1602 = vsub.f32 %v1589, %v1599
    %v1603 = vsub.f32 %v1592, %v1601
    %v1604 = vmul.f32 %v1602, 1.442695
    %v1605 = vpow.pop %v1604
    %v1606 = vmul.f32 %v1603, 1.442695
    %v1607 = vpow.pop %v1606
    %1608 = vadd.xlane.f32.xlu0 %v1605
    %v1609 = vpop.xlane.xlu0 %1608
    %1610 = vadd.xlane.f32.xlu0 %v1607
    %v1611 = vpop.xlane.xlu0 %1610
    %v1612 = vlog2.pop %v1609
    %v1613 = vmul.f32 %v1612, 0.6931472
    %v1614 = vlog2.pop %v1611
    %v1615 = vmul.f32 %v1614, 0.6931472
    %v1616 = vadd.f32 %v1613, %v1599
    %v1617 = vadd.f32 %v1615, %v1601
    %1618 = vset.pattern.permute.xlu0 0
    %1619 = vperm.xlu0 %1618, %v1596
    %v1620 = vpop.permute.xlu0 %1619
    %1621 = vset.pattern.permute.xlu0 0
    %1622 = vperm.xlu0 %1621, %v1597
    %v1623 = vpop.permute.xlu0 %1622
    %vm1624 = vcmp.eq.s32.totalorder %v129, %v1620
    %vm1625 = vcmp.eq.s32.totalorder %v129, %v1623
    %v1626 = vsel %vm1624, 1, 0
    %v1627 = vsel %vm1625, 1, 0
    %v1628 = vcvt.s32.f32 %v1626
    %v1629 = vcvt.s32.f32 %v1627
    %v1630 = vmul.f32 %v1589, %v1628
    %v1631 = vmul.f32 %v1592, %v1629
    %1632 = vadd.xlane.f32.xlu0 %v1630
    %v1633 = vpop.xlane.xlu0 %1632
    %1634 = vadd.xlane.f32.xlu0 %v1631
    %v1635 = vpop.xlane.xlu0 %1634
    %vm1636 = vcmp.ne.s32.totalorder %v1596, 4294967196
    %vm1637 = vcmp.ne.s32.totalorder %v1597, 4294967196
    %v1638 = vsel %vm1636, 1, 0
    %v1639 = vsel %vm1637, 1, 0
    %v1640 = vcvt.s32.f32 %v1638
    %v1641 = vcvt.s32.f32 %v1639
    %v1642 = vsub.f32 %v1616, %v1633
    %v1643 = vsub.f32 %v1617, %v1635
    %v1644 = vmul.f32 %v1642, %v1640
    %v1645 = vmul.f32 %v1643, %v1641
    %vm1646 = vcmask 7168
    %v1647 = vsel %vm1646, %v1644, 0.0
    %v1648 = vsel %vm1646, %v1645, 0.0
    %v1649 = vadd.f32 %v1647, %v1648
    %1650 = vadd.xlane.f32.xlu0 %v1649
    %v1651 = vpop.xlane.xlu0 %1650
    %v1652 = vrot.slane %v1651, 4
    %v1653 = vadd.f32 %v1651, %v1652
    %v1654 = vrot.slane %v1653, 2
    %v1655 = vadd.f32 %v1653, %v1654
    %v1656 = vrot.slane %v1655, 1
    %v1657 = vadd.f32 %v1655, %v1656
    %s1658 = vtos %v1657
    %v1659 = vsel %vm1646, %v1640, 0.0
    %v1660 = vsel %vm1646, %v1641, 0.0
    %v1661 = vadd.f32 %v1659, %v1660
    %1662 = vadd.xlane.f32.xlu0 %v1661
    %v1663 = vpop.xlane.xlu0 %1662
    %v1664 = vrot.slane %v1663, 4
    %v1665 = vadd.f32 %v1663, %v1664
    %v1666 = vrot.slane %v1665, 2
    %v1667 = vadd.f32 %v1665, %v1666
    %v1668 = vrot.slane %v1667, 1
    %v1669 = vadd.f32 %v1667, %v1668
    %s1670 = vtos %v1669
    %v1671 = vstv %s1670
    %v1672 = vrcp.pop %v1671
    %v1673 = vmul.f32 %v1671, %v1672
    %v1674 = vsub.f32 1.0, %v1673
    %v1675 = vmul.f32 %v1672, %v1674
    %v1676 = vadd.f32 %v1672, %v1675
    %vm1677 = vweird.f32 %v1671
    %vm1678 = vweird.f32 %v1672
    %vm1679 = vmor %vm1677, %vm1678
    %v1680 = vsel %vm1679, %v1672, %v1676
    %v1681 = vand.u32 2147483647, %v1671
    %vm1682 = vcmp.eq.f32.partialorder %v1681, 8.507059e+37
    %v1683 = vand.u32 %v1671, 2147483648
    %v1684 = vor.u32 1.1754944e-38, %v1683
    %v1685 = vsel %vm1682, %v1684, %v1680
    %s1686 = vtos %v1685
    %s1687 = smul.f32 %s1658, %s1686
    %s1688 = scalar_lea.smem [#allocation5], 0
    %1689 = sst [smem:[%s1688]] %s1687
    // Predicated region
    $region114: #{task_model_forward.1} parent=1 // pred_check
      _
    $region115: #{task_model_forward.1} parent=1 // pred_check_branch
      %1691 = sbr.rel (0) target = $region117
    $region116: #{task_model_forward.1} parent=1 // pred_region
      _
    $region117: #{task_model_forward.1} parent=1 // pred_fallthru
      _
    // Predicated region
    $region118: #{task_model_forward.1} parent=1 // pred_check
      _
    $region119: #{task_model_forward.1} parent=1 // pred_check_branch
      %1693 = sbr.rel (0) target = $region121
    $region120: #{task_model_forward.1} parent=1 // pred_region
      %1695 = vsyncadd [#allocation3], 0
      %s1696 = sshll.u32 [#allocation2], 4
      %s1697 = int_to_ptr.vmem [resolvable:$true] %s1696
      %s1698 = sshll.u32 %s59, 4
      %s1699 = int_to_ptr.hbm [resolvable:$true] %s1698
      %1704 = dma.vmem_to_hbm [thread:$0]  %s1697, 256, %s1699, [#allocation3], 128, 128, 8
    $region121: #{task_model_forward.1} parent=1 // pred_fallthru
      _
    // Predicated region
    $region122: #{task_model_forward.1} parent=1 // pred_check
      _
    $region123: #{task_model_forward.1} parent=1 // pred_check_branch
      %1706 = sbr.rel (0) target = $region125
    $region124: #{task_model_forward.1} parent=1 // pred_region
      %1708 = vsyncadd [#allocation4], 0
      %s1710 = sshll.u32 %s61, 4
      %s1711 = int_to_ptr.hbm [resolvable:$true] %s1710
      %1713 = dma.smem_to_hbm [#allocation5], 16, %s1711, [#allocation4]
    $region125: #{task_model_forward.1} parent=1 // pred_fallthru
      _
    // Predicated region
    $region126: #{task_model_forward.1} parent=1 // pred_check
      _
    $region127: #{task_model_forward.1} parent=1 // pred_check_branch
      %1715 = sbr.rel (0) target = $region129
    $region128: #{task_model_forward.1} parent=1 // pred_region
      _
    $region129: #{task_model_forward.1} parent=1 // pred_fallthru
      _
    // Predicated region
    $region130: #{task_model_forward.1} parent=1 // pred_check
      _
    $region131: #{task_model_forward.1} parent=1 // pred_check_branch
      %1717 = sbr.rel (0) target = $region133
    $region132: #{task_model_forward.1} parent=1 // pred_region
      %1719 = dma.done [#allocation3], 256
    $region133: #{task_model_forward.1} parent=1 // pred_fallthru
      _
    // Predicated region
    $region134: #{task_model_forward.1} parent=1 // pred_check
      _
    $region135: #{task_model_forward.1} parent=1 // pred_check_branch
      %1721 = sbr.rel (0) target = $region137
    $region136: #{task_model_forward.1} parent=1 // pred_region
      %1723 = dma.done [#allocation4], 16
    $region137: #{task_model_forward.1} parent=1 // pred_fallthru
      _
    %1724 = sfence
    %1725 = vsyncpa [#allocation3], 1
    %1726 = vsyncpa [#allocation4], 1

</llo_original>
